<compile_context>
chip_gen: v5e
topology: v5e:2x2
jax: 0.10.0
libtpu: 0.0.40
codegen_flags: <defaults>
</compile_context>

<pallas_src>
import math

import jax
import jax.numpy as jnp
from jax import lax
from jax.experimental import pallas as pl
from jax.experimental.pallas import tpu as pltpu

NEG_SLOPE = 0.01   # nn.LeakyReLU default negative_slope
BN_EPS = 1e-5
G = 128            # lanes per gate group (one full lane group per gate)


# ----------------------------- Pallas kernel ------------------------------ #
def _gru_head_kernel(x_ref, wbig_ref, vec_ref, out_ref):
    """Full GRU recurrence + BN/LeakyReLU/Linear head in one kernel.

    x_ref   : (T, B, 1)     f32   input sequence, time-major
    wbig_ref: (H, 3*G + L)  bf16  [:, :3G] = gate-padded [W_hr | W_hz | W_hn]
                                  [:, 3G:] = fc_0 weight (H, L)
    vec_ref : (10, 3*G)     f32   row 0: gate-padded w_i (D==1 row)
                                  row 1: gate-padded (b_ir+b_hr | b_iz+b_hz | b_in)
                                  row 2: b_hn              (lanes [0,H))
                                  row 3/4: BN0 scale/shift (lanes [0,H))
                                  row 5: fc_0 bias         (lanes [0,L))
                                  row 6/7: BN1 scale/shift (lanes [0,L))
                                  row 8: fc_1 weight row   (lanes [0,L))
                                  row 9: fc_1 bias         (lane 0)
    out_ref : (B, 1)        f32
    """
    T, B, _ = x_ref.shape
    H = wbig_ref.shape[0]
    L = wbig_ref.shape[1] - 3 * G

    # Loop-invariant loads, hoisted out of the recurrence.
    whh = wbig_ref[:, :3 * G]          # (H, 3G) bf16
    w0 = wbig_ref[:, 3 * G:]           # (H, L)  bf16
    wi = vec_ref[0:1, :]               # (1, 3G)
    bi = vec_ref[1:2, :]               # (1, 3G)
    bhn = vec_ref[2:3, :G]             # (1, G)  data in lanes [0,H)
    bn0s = vec_ref[3:4, :H]
    bn0b = vec_ref[4:5, :H]
    b0 = vec_ref[5:6, :L]
    bn1s = vec_ref[6:7, :L]
    bn1b = vec_ref[7:8, :L]
    w1r = vec_ref[8:9, :L]
    b1 = vec_ref[9:10, :1]

    def step(t, h):
        # Input projection (D == 1): pure VPU broadcast, off the h critical path.
        gi = x_ref[t] * wi + bi                                          # (B, 3G)
        # Single fused recurrent matmul; bf16 operands, f32 accumulation.
        gh = jnp.dot(h.astype(jnp.bfloat16), whh,
                     preferred_element_type=jnp.float32)                 # (B, 3G)
        # Whole-lane-group gate slices -> no XLU relayout on the serial chain.
        # Lanes >= H in each group carry zeros/garbage and are dropped below.
        r = jax.nn.sigmoid(gi[:, :G] + gh[:, :G])
        z = jax.nn.sigmoid(gi[:, G:2 * G] + gh[:, G:2 * G])
        n = jnp.tanh(gi[:, 2 * G:] + r * (gh[:, 2 * G:] + bhn))
        z_h = z[:, :H]                                                   # offset-0 slices
        return (1.0 - z_h) * n[:, :H] + z_h * h

    h0 = jnp.zeros((B, H), jnp.float32)
    hn = lax.fori_loop(0, T, step, h0, unroll=True)                      # (B, H)

    def lrelu(v):
        return jnp.where(v >= 0, v, NEG_SLOPE * v)

    y = lrelu(hn * bn0s + bn0b)                                          # BN0 + LeakyReLU
    y = jnp.dot(y.astype(jnp.bfloat16), w0,
                preferred_element_type=jnp.float32) + b0                 # fc_0
    y = lrelu(y * bn1s + bn1b)                                           # BN1 + LeakyReLU
    # fc_1 (L -> 1): VPU multiply + lane reduction instead of a 1-lane MXU matmul.
    out_ref[...] = jnp.sum(y * w1r, axis=-1, keepdims=True) + b1


# ------------------------------- wrapper ----------------------------------- #
def gru_base_forward(x, params):
    """x: (B, T, input_size) float32 (batch_first, like PyTorch). Returns (B, E)."""
    B, T, D = x.shape
    H = params["w_hh"].shape[2]
    L = params["w0"].shape[1]
    E = params["w1"].shape[1]
    assert D == 1, "kernel folds the D==1 input projection into a VPU broadcast"
    assert E == 1, "fc_1 is lowered as a lane reduction (out_features_end == 1)"
    # TODO(synk): for general D/E reintroduce MXU projections; for production T/B,
    #   tile the time axis with a BlockSpec (halve the tile for v7x's 64 MiB VMEM),
    #   add a 'parallel' batch grid axis for v7x's two TensorCores, and raise
    #   vmem_limit_bytes via pltpu.CompilerParams on v5e/v6e.

    # Fold BatchNorm1d (inference mode, running stats) into scale/shift.
    bn0_scale = params["bn0_gamma"] / jnp.sqrt(params["bn0_var"] + BN_EPS)
    bn0_shift = params["bn0_beta"] - params["bn0_mean"] * bn0_scale
    bn1_scale = params["bn1_gamma"] / jnp.sqrt(params["bn1_var"] + BN_EPS)
    bn1_shift = params["bn1_beta"] - params["bn1_mean"] * bn1_scale

    def gate_pad(w):           # (..., H) -> (..., 128): each gate gets its own lane group
        return jnp.pad(w, [(0, 0)] * (w.ndim - 1) + [(0, G - w.shape[-1])])

    def lane_row(v):           # (n,) -> (1, 3G) with v in lanes [0, n)
        return jnp.pad(v.reshape(1, -1), ((0, 0), (0, 3 * G - v.shape[0])))

    # Weight slab (bf16): gate-padded [W_hr | W_hz | W_hn] ++ fc_0 weight.
    whh_pad = jnp.concatenate([gate_pad(params["w_hh"][g]) for g in range(3)], axis=1)
    w_big = jnp.concatenate([whh_pad, params["w0"]], axis=1).astype(jnp.bfloat16)

    # Vector slab (f32): input-projection row, folded biases, BN / linear params.
    wi_row = jnp.concatenate([gate_pad(params["w_ih"][g]) for g in range(3)], axis=1)
    bi_row = jnp.concatenate(
        [gate_pad((params["b_ih"][0] + params["b_hh"][0]).reshape(1, -1)),   # r
         gate_pad((params["b_ih"][1] + params["b_hh"][1]).reshape(1, -1)),   # z
         gate_pad(params["b_ih"][2].reshape(1, -1))], axis=1)                # n (input bias only)
    vecs = jnp.concatenate(
        [wi_row, bi_row,
         lane_row(params["b_hh"][2]),                  # b_hn (applied inside r*(.))
         lane_row(bn0_scale), lane_row(bn0_shift),
         lane_row(params["b0"]),
         lane_row(bn1_scale), lane_row(bn1_shift),
         lane_row(params["w1"][:, 0]),                 # fc_1 weight as a row
         lane_row(params["b1"])], axis=0)              # (10, 3G)

    # Transpose the tiny (B,T,1) input (16 elems), not a (B,T,3H) activation.
    x_tb1 = jnp.transpose(x, (1, 0, 2))                # (T, B, 1)

    cost = pl.CostEstimate(
        flops=int(T * (2 * B * H * 3 * G + 20 * B * 3 * G) + 2 * B * H * L + 10 * B * L),
        transcendentals=int(T * 3 * B * G),
        bytes_accessed=int(x_tb1.size * 4 + w_big.size * 2 + vecs.size * 4 + B * E * 4),
    )

    out = pl.pallas_call(
        _gru_head_kernel,
        out_shape=jax.ShapeDtypeStruct((B, E), jnp.float32),
        in_specs=[pl.BlockSpec(memory_space=pltpu.MemorySpace.VMEM)] * 3,
        out_specs=pl.BlockSpec(memory_space=pltpu.MemorySpace.VMEM),
        cost_estimate=cost,
    )(x_tb1, w_big, vecs)
    return out


# -------------------------- reference (pure JAX) --------------------------- #
def gru_base_reference(x, params):
    B, T, D = x.shape
    H = params["w_hh"].shape[2]

    def lrelu(v):
        return jnp.where(v >= 0, v, NEG_SLOPE * v)

    def cell(h, x_t):
        gi = [x_t @ params["w_ih"][g] + params["b_ih"][g] for g in range(3)]
        gh = [h @ params["w_hh"][g] + params["b_hh"][g] for g in range(3)]
        r = jax.nn.sigmoid(gi[0] + gh[0])
        z = jax.nn.sigmoid(gi[1] + gh[1])
        n = jnp.tanh(gi[2] + r * gh[2])
        h_new = (1.0 - z) * n + z * h
        return h_new, None

    h0 = jnp.zeros((B, H), jnp.float32)
    hn, _ = lax.scan(cell, h0, jnp.transpose(x, (1, 0, 2)))

    bn0_scale = params["bn0_gamma"] / jnp.sqrt(params["bn0_var"] + BN_EPS)
    bn0_shift = params["bn0_beta"] - params["bn0_mean"] * bn0_scale
    bn1_scale = params["bn1_gamma"] / jnp.sqrt(params["bn1_var"] + BN_EPS)
    bn1_shift = params["bn1_beta"] - params["bn1_mean"] * bn1_scale

    y = lrelu(hn * bn0_scale + bn0_shift)
    y = y @ params["w0"] + params["b0"]
    y = lrelu(y * bn1_scale + bn1_shift)
    return y @ params["w1"] + params["b1"]


# ---------------------------- parameter init ------------------------------- #
def init_params(key, input_size=1, hidden_size=32, out_features_lin=32, out_features_end=1):
    D, H, L, E = input_size, hidden_size, out_features_lin, out_features_end
    ks = jax.random.split(key, 8)
    stdv = 1.0 / math.sqrt(H)  # PyTorch nn.GRU default init

    def xavier(k, fan_in, fan_out):
        bound = math.sqrt(6.0 / (fan_in + fan_out))
        return jax.random.uniform(k, (fan_in, fan_out), jnp.float32, -bound, bound)

    return {
        # GRU weights, gate order [r, z, n], stored pre-transposed for x @ W
        "w_ih": jax.random.uniform(ks[0], (3, D, H), jnp.float32, -stdv, stdv),
        "w_hh": jax.random.uniform(ks[1], (3, H, H), jnp.float32, -stdv, stdv),
        "b_ih": jax.random.uniform(ks[2], (3, H), jnp.float32, -stdv, stdv),
        "b_hh": jax.random.uniform(ks[3], (3, H), jnp.float32, -stdv, stdv),
        # BatchNorm1d (inference-mode running stats)
        "bn0_gamma": jnp.ones((H,), jnp.float32),
        "bn0_beta": jnp.zeros((H,), jnp.float32),
        "bn0_mean": jnp.zeros((H,), jnp.float32),
        "bn0_var": jnp.ones((H,), jnp.float32),
        "bn1_gamma": jnp.ones((L,), jnp.float32),
        "bn1_beta": jnp.zeros((L,), jnp.float32),
        "bn1_mean": jnp.zeros((L,), jnp.float32),
        "bn1_var": jnp.ones((L,), jnp.float32),
        # Linear layers: xavier_uniform weights, zero bias (as in __init__)
        "w0": xavier(ks[4], H, L),
        "b0": jnp.zeros((L,), jnp.float32),
        "w1": xavier(ks[5], L, E),
        "b1": jnp.zeros((E,), jnp.float32),
    }


if __name__ == "__main__":
    key = jax.random.PRNGKey(0)
    k_x, k_p = jax.random.split(key)

    B, T, D = 2, 8, 1  # batch=2, seq=8, input_size=1 (as in the PyTorch module)
    x = jax.random.normal(k_x, (B, T, D), jnp.float32)
    params = init_params(k_p)

    fwd = jax.jit(gru_base_forward)
    out = jax.block_until_ready(fwd(x, params))
    ref = jax.block_until_ready(gru_base_reference(x, params))

    assert out.shape == (B, 1)
    # Tolerance relaxed from 1e-5 to 2e-2 because the recurrent / fc_0 matmul
    # operands are bf16 (f32 accumulation); the f32 reference is unchanged.
    assert jnp.allclose(out, ref, atol=2e-2, rtol=2e-2), (out, ref)
    print("KERNEL_OK")
</pallas_src>

<mosaic_0001>
module attributes {stable_mosaic.version = 11 : i64} {
  func.func @_gru_head_kernel(%arg0: memref<8x2x1xf32, #tpu.memory_space<vmem>>, %arg1: memref<32x416xbf16, #tpu.memory_space<vmem>>, %arg2: memref<10x384xf32, #tpu.memory_space<vmem>>, %arg3: memref<2x1xf32, #tpu.memory_space<vmem>>) attributes {dimension_semantics = [], scalar_prefetch = 0 : i64, scratch_operands = 0 : i64, tpu.core_type = #tpu.core_type<tc>} {
    %c0 = arith.constant 0 : index
    %c0_0 = arith.constant 0 : index
    %0 = vector.load %arg1[%c0, %c0_0] : memref<32x416xbf16, #tpu.memory_space<vmem>>, vector<32x384xbf16>
    %c0_1 = arith.constant 0 : index
    %c384 = arith.constant 384 : index
    %1 = vector.load %arg1[%c0_1, %c384] : memref<32x416xbf16, #tpu.memory_space<vmem>>, vector<32x32xbf16>
    %c0_2 = arith.constant 0 : index
    %c0_3 = arith.constant 0 : index
    %2 = vector.load %arg2[%c0_2, %c0_3] : memref<10x384xf32, #tpu.memory_space<vmem>>, vector<1x384xf32>
    %c1 = arith.constant 1 : index
    %c0_4 = arith.constant 0 : index
    %3 = vector.load %arg2[%c1, %c0_4] : memref<10x384xf32, #tpu.memory_space<vmem>>, vector<1x384xf32>
    %c2 = arith.constant 2 : index
    %c0_5 = arith.constant 0 : index
    %4 = vector.load %arg2[%c2, %c0_5] : memref<10x384xf32, #tpu.memory_space<vmem>>, vector<1x128xf32>
    %c3 = arith.constant 3 : index
    %c0_6 = arith.constant 0 : index
    %5 = vector.load %arg2[%c3, %c0_6] : memref<10x384xf32, #tpu.memory_space<vmem>>, vector<1x32xf32>
    %c4 = arith.constant 4 : index
    %c0_7 = arith.constant 0 : index
    %6 = vector.load %arg2[%c4, %c0_7] : memref<10x384xf32, #tpu.memory_space<vmem>>, vector<1x32xf32>
    %c5 = arith.constant 5 : index
    %c0_8 = arith.constant 0 : index
    %7 = vector.load %arg2[%c5, %c0_8] : memref<10x384xf32, #tpu.memory_space<vmem>>, vector<1x32xf32>
    %c6 = arith.constant 6 : index
    %c0_9 = arith.constant 0 : index
    %8 = vector.load %arg2[%c6, %c0_9] : memref<10x384xf32, #tpu.memory_space<vmem>>, vector<1x32xf32>
    %c7 = arith.constant 7 : index
    %c0_10 = arith.constant 0 : index
    %9 = vector.load %arg2[%c7, %c0_10] : memref<10x384xf32, #tpu.memory_space<vmem>>, vector<1x32xf32>
    %c8 = arith.constant 8 : index
    %c0_11 = arith.constant 0 : index
    %10 = vector.load %arg2[%c8, %c0_11] : memref<10x384xf32, #tpu.memory_space<vmem>>, vector<1x32xf32>
    %c9 = arith.constant 9 : index
    %c0_12 = arith.constant 0 : index
    %11 = vector.load %arg2[%c9, %c0_12] : memref<10x384xf32, #tpu.memory_space<vmem>>, vector<1x1xf32>
    %cst = arith.constant 0.000000e+00 : f32
    %12 = vector.broadcast %cst : f32 to vector<2x32xf32>
    %c0_i32 = arith.constant 0 : i32
    %13 = arith.index_cast %c0_i32 : i32 to index
    %c0_13 = arith.constant 0 : index
    %c0_14 = arith.constant 0 : index
    %14 = vector.load %arg0[%13, %c0_13, %c0_14] : memref<8x2x1xf32, #tpu.memory_space<vmem>>, vector<1x2x1xf32>
    %15 = vector.shape_cast %14 : vector<1x2x1xf32> to vector<2x1xf32>
    %16 = vector.broadcast %15 : vector<2x1xf32> to vector<2x384xf32>
    %17 = vector.broadcast %2 : vector<1x384xf32> to vector<2x384xf32>
    %18 = arith.mulf %16, %17 : vector<2x384xf32>
    %19 = vector.broadcast %3 : vector<1x384xf32> to vector<2x384xf32>
    %20 = arith.addf %18, %19 : vector<2x384xf32>
    %21 = arith.truncf %12 : vector<2x32xf32> to vector<2x32xbf16>
    %cst_15 = arith.constant dense<0.000000e+00> : vector<2x384xf32>
    %22 = tpu.matmul %21, %0, %cst_15 {dimension_numbers = #tpu.dot_dimension_numbers<[1], [0], [0], [1], [0, 0, 1, 1], [], []>} : vector<2x32xbf16>, vector<32x384xbf16>, vector<2x384xf32> -> vector<2x384xf32>
    %23 = vector.extract_strided_slice %20 {offsets = [0, 0], sizes = [2, 128], strides = [1, 1]} : vector<2x384xf32> to vector<2x128xf32>
    %24 = vector.extract_strided_slice %22 {offsets = [0, 0], sizes = [2, 128], strides = [1, 1]} : vector<2x384xf32> to vector<2x128xf32>
    %25 = arith.addf %23, %24 : vector<2x128xf32>
    %26 = arith.negf %25 : vector<2x128xf32>
    %27 = math.exp %26 : vector<2x128xf32>
    %cst_16 = arith.constant 1.000000e+00 : f32
    %28 = vector.broadcast %cst_16 : f32 to vector<2x128xf32>
    %29 = arith.addf %28, %27 : vector<2x128xf32>
    %30 = arith.divf %28, %29 : vector<2x128xf32>
    %31 = vector.extract_strided_slice %20 {offsets = [0, 128], sizes = [2, 128], strides = [1, 1]} : vector<2x384xf32> to vector<2x128xf32>
    %32 = vector.extract_strided_slice %22 {offsets = [0, 128], sizes = [2, 128], strides = [1, 1]} : vector<2x384xf32> to vector<2x128xf32>
    %33 = arith.addf %31, %32 : vector<2x128xf32>
    %34 = arith.negf %33 : vector<2x128xf32>
    %35 = math.exp %34 : vector<2x128xf32>
    %cst_17 = arith.constant 1.000000e+00 : f32
    %36 = vector.broadcast %cst_17 : f32 to vector<2x128xf32>
    %37 = arith.addf %36, %35 : vector<2x128xf32>
    %38 = arith.divf %36, %37 : vector<2x128xf32>
    %39 = vector.extract_strided_slice %20 {offsets = [0, 256], sizes = [2, 128], strides = [1, 1]} : vector<2x384xf32> to vector<2x128xf32>
    %40 = vector.extract_strided_slice %22 {offsets = [0, 256], sizes = [2, 128], strides = [1, 1]} : vector<2x384xf32> to vector<2x128xf32>
    %41 = vector.broadcast %4 : vector<1x128xf32> to vector<2x128xf32>
    %42 = arith.addf %40, %41 : vector<2x128xf32>
    %43 = arith.mulf %30, %42 : vector<2x128xf32>
    %44 = arith.addf %39, %43 : vector<2x128xf32>
    %45 = math.tanh %44 : vector<2x128xf32>
    %46 = vector.extract_strided_slice %38 {offsets = [0, 0], sizes = [2, 32], strides = [1, 1]} : vector<2x128xf32> to vector<2x32xf32>
    %cst_18 = arith.constant 1.000000e+00 : f32
    %47 = vector.broadcast %cst_18 : f32 to vector<2x32xf32>
    %48 = arith.subf %47, %46 : vector<2x32xf32>
    %49 = vector.extract_strided_slice %45 {offsets = [0, 0], sizes = [2, 32], strides = [1, 1]} : vector<2x128xf32> to vector<2x32xf32>
    %50 = arith.mulf %48, %49 : vector<2x32xf32>
    %51 = arith.mulf %46, %12 : vector<2x32xf32>
    %52 = arith.addf %50, %51 : vector<2x32xf32>
    %c1_i32 = arith.constant 1 : i32
    %53 = arith.index_cast %c1_i32 : i32 to index
    %c0_19 = arith.constant 0 : index
    %c0_20 = arith.constant 0 : index
    %54 = vector.load %arg0[%53, %c0_19, %c0_20] : memref<8x2x1xf32, #tpu.memory_space<vmem>>, vector<1x2x1xf32>
    %55 = vector.shape_cast %54 : vector<1x2x1xf32> to vector<2x1xf32>
    %56 = vector.broadcast %55 : vector<2x1xf32> to vector<2x384xf32>
    %57 = vector.broadcast %2 : vector<1x384xf32> to vector<2x384xf32>
    %58 = arith.mulf %56, %57 : vector<2x384xf32>
    %59 = vector.broadcast %3 : vector<1x384xf32> to vector<2x384xf32>
    %60 = arith.addf %58, %59 : vector<2x384xf32>
    %61 = arith.truncf %52 : vector<2x32xf32> to vector<2x32xbf16>
    %cst_21 = arith.constant dense<0.000000e+00> : vector<2x384xf32>
    %62 = tpu.matmul %61, %0, %cst_21 {dimension_numbers = #tpu.dot_dimension_numbers<[1], [0], [0], [1], [0, 0, 1, 1], [], []>} : vector<2x32xbf16>, vector<32x384xbf16>, vector<2x384xf32> -> vector<2x384xf32>
    %63 = vector.extract_strided_slice %60 {offsets = [0, 0], sizes = [2, 128], strides = [1, 1]} : vector<2x384xf32> to vector<2x128xf32>
    %64 = vector.extract_strided_slice %62 {offsets = [0, 0], sizes = [2, 128], strides = [1, 1]} : vector<2x384xf32> to vector<2x128xf32>
    %65 = arith.addf %63, %64 : vector<2x128xf32>
    %66 = arith.negf %65 : vector<2x128xf32>
    %67 = math.exp %66 : vector<2x128xf32>
    %cst_22 = arith.constant 1.000000e+00 : f32
    %68 = vector.broadcast %cst_22 : f32 to vector<2x128xf32>
    %69 = arith.addf %68, %67 : vector<2x128xf32>
    %70 = arith.divf %68, %69 : vector<2x128xf32>
    %71 = vector.extract_strided_slice %60 {offsets = [0, 128], sizes = [2, 128], strides = [1, 1]} : vector<2x384xf32> to vector<2x128xf32>
    %72 = vector.extract_strided_slice %62 {offsets = [0, 128], sizes = [2, 128], strides = [1, 1]} : vector<2x384xf32> to vector<2x128xf32>
    %73 = arith.addf %71, %72 : vector<2x128xf32>
    %74 = arith.negf %73 : vector<2x128xf32>
    %75 = math.exp %74 : vector<2x128xf32>
    %cst_23 = arith.constant 1.000000e+00 : f32
    %76 = vector.broadcast %cst_23 : f32 to vector<2x128xf32>
    %77 = arith.addf %76, %75 : vector<2x128xf32>
    %78 = arith.divf %76, %77 : vector<2x128xf32>
    %79 = vector.extract_strided_slice %60 {offsets = [0, 256], sizes = [2, 128], strides = [1, 1]} : vector<2x384xf32> to vector<2x128xf32>
    %80 = vector.extract_strided_slice %62 {offsets = [0, 256], sizes = [2, 128], strides = [1, 1]} : vector<2x384xf32> to vector<2x128xf32>
    %81 = vector.broadcast %4 : vector<1x128xf32> to vector<2x128xf32>
    %82 = arith.addf %80, %81 : vector<2x128xf32>
    %83 = arith.mulf %70, %82 : vector<2x128xf32>
    %84 = arith.addf %79, %83 : vector<2x128xf32>
    %85 = math.tanh %84 : vector<2x128xf32>
    %86 = vector.extract_strided_slice %78 {offsets = [0, 0], sizes = [2, 32], strides = [1, 1]} : vector<2x128xf32> to vector<2x32xf32>
    %cst_24 = arith.constant 1.000000e+00 : f32
    %87 = vector.broadcast %cst_24 : f32 to vector<2x32xf32>
    %88 = arith.subf %87, %86 : vector<2x32xf32>
    %89 = vector.extract_strided_slice %85 {offsets = [0, 0], sizes = [2, 32], strides = [1, 1]} : vector<2x128xf32> to vector<2x32xf32>
    %90 = arith.mulf %88, %89 : vector<2x32xf32>
    %91 = arith.mulf %86, %52 : vector<2x32xf32>
    %92 = arith.addf %90, %91 : vector<2x32xf32>
    %c2_i32 = arith.constant 2 : i32
    %93 = arith.index_cast %c2_i32 : i32 to index
    %c0_25 = arith.constant 0 : index
    %c0_26 = arith.constant 0 : index
    %94 = vector.load %arg0[%93, %c0_25, %c0_26] : memref<8x2x1xf32, #tpu.memory_space<vmem>>, vector<1x2x1xf32>
    %95 = vector.shape_cast %94 : vector<1x2x1xf32> to vector<2x1xf32>
    %96 = vector.broadcast %95 : vector<2x1xf32> to vector<2x384xf32>
    %97 = vector.broadcast %2 : vector<1x384xf32> to vector<2x384xf32>
    %98 = arith.mulf %96, %97 : vector<2x384xf32>
    %99 = vector.broadcast %3 : vector<1x384xf32> to vector<2x384xf32>
    %100 = arith.addf %98, %99 : vector<2x384xf32>
    %101 = arith.truncf %92 : vector<2x32xf32> to vector<2x32xbf16>
    %cst_27 = arith.constant dense<0.000000e+00> : vector<2x384xf32>
    %102 = tpu.matmul %101, %0, %cst_27 {dimension_numbers = #tpu.dot_dimension_numbers<[1], [0], [0], [1], [0, 0, 1, 1], [], []>} : vector<2x32xbf16>, vector<32x384xbf16>, vector<2x384xf32> -> vector<2x384xf32>
    %103 = vector.extract_strided_slice %100 {offsets = [0, 0], sizes = [2, 128], strides = [1, 1]} : vector<2x384xf32> to vector<2x128xf32>
    %104 = vector.extract_strided_slice %102 {offsets = [0, 0], sizes = [2, 128], strides = [1, 1]} : vector<2x384xf32> to vector<2x128xf32>
    %105 = arith.addf %103, %104 : vector<2x128xf32>
    %106 = arith.negf %105 : vector<2x128xf32>
    %107 = math.exp %106 : vector<2x128xf32>
    %cst_28 = arith.constant 1.000000e+00 : f32
    %108 = vector.broadcast %cst_28 : f32 to vector<2x128xf32>
    %109 = arith.addf %108, %107 : vector<2x128xf32>
    %110 = arith.divf %108, %109 : vector<2x128xf32>
    %111 = vector.extract_strided_slice %100 {offsets = [0, 128], sizes = [2, 128], strides = [1, 1]} : vector<2x384xf32> to vector<2x128xf32>
    %112 = vector.extract_strided_slice %102 {offsets = [0, 128], sizes = [2, 128], strides = [1, 1]} : vector<2x384xf32> to vector<2x128xf32>
    %113 = arith.addf %111, %112 : vector<2x128xf32>
    %114 = arith.negf %113 : vector<2x128xf32>
    %115 = math.exp %114 : vector<2x128xf32>
    %cst_29 = arith.constant 1.000000e+00 : f32
    %116 = vector.broadcast %cst_29 : f32 to vector<2x128xf32>
    %117 = arith.addf %116, %115 : vector<2x128xf32>
    %118 = arith.divf %116, %117 : vector<2x128xf32>
    %119 = vector.extract_strided_slice %100 {offsets = [0, 256], sizes = [2, 128], strides = [1, 1]} : vector<2x384xf32> to vector<2x128xf32>
    %120 = vector.extract_strided_slice %102 {offsets = [0, 256], sizes = [2, 128], strides = [1, 1]} : vector<2x384xf32> to vector<2x128xf32>
    %121 = vector.broadcast %4 : vector<1x128xf32> to vector<2x128xf32>
    %122 = arith.addf %120, %121 : vector<2x128xf32>
    %123 = arith.mulf %110, %122 : vector<2x128xf32>
    %124 = arith.addf %119, %123 : vector<2x128xf32>
    %125 = math.tanh %124 : vector<2x128xf32>
    %126 = vector.extract_strided_slice %118 {offsets = [0, 0], sizes = [2, 32], strides = [1, 1]} : vector<2x128xf32> to vector<2x32xf32>
    %cst_30 = arith.constant 1.000000e+00 : f32
    %127 = vector.broadcast %cst_30 : f32 to vector<2x32xf32>
    %128 = arith.subf %127, %126 : vector<2x32xf32>
    %129 = vector.extract_strided_slice %125 {offsets = [0, 0], sizes = [2, 32], strides = [1, 1]} : vector<2x128xf32> to vector<2x32xf32>
    %130 = arith.mulf %128, %129 : vector<2x32xf32>
    %131 = arith.mulf %126, %92 : vector<2x32xf32>
    %132 = arith.addf %130, %131 : vector<2x32xf32>
    %c3_i32 = arith.constant 3 : i32
    %133 = arith.index_cast %c3_i32 : i32 to index
    %c0_31 = arith.constant 0 : index
    %c0_32 = arith.constant 0 : index
    %134 = vector.load %arg0[%133, %c0_31, %c0_32] : memref<8x2x1xf32, #tpu.memory_space<vmem>>, vector<1x2x1xf32>
    %135 = vector.shape_cast %134 : vector<1x2x1xf32> to vector<2x1xf32>
    %136 = vector.broadcast %135 : vector<2x1xf32> to vector<2x384xf32>
    %137 = vector.broadcast %2 : vector<1x384xf32> to vector<2x384xf32>
    %138 = arith.mulf %136, %137 : vector<2x384xf32>
    %139 = vector.broadcast %3 : vector<1x384xf32> to vector<2x384xf32>
    %140 = arith.addf %138, %139 : vector<2x384xf32>
    %141 = arith.truncf %132 : vector<2x32xf32> to vector<2x32xbf16>
    %cst_33 = arith.constant dense<0.000000e+00> : vector<2x384xf32>
    %142 = tpu.matmul %141, %0, %cst_33 {dimension_numbers = #tpu.dot_dimension_numbers<[1], [0], [0], [1], [0, 0, 1, 1], [], []>} : vector<2x32xbf16>, vector<32x384xbf16>, vector<2x384xf32> -> vector<2x384xf32>
    %143 = vector.extract_strided_slice %140 {offsets = [0, 0], sizes = [2, 128], strides = [1, 1]} : vector<2x384xf32> to vector<2x128xf32>
    %144 = vector.extract_strided_slice %142 {offsets = [0, 0], sizes = [2, 128], strides = [1, 1]} : vector<2x384xf32> to vector<2x128xf32>
    %145 = arith.addf %143, %144 : vector<2x128xf32>
    %146 = arith.negf %145 : vector<2x128xf32>
    %147 = math.exp %146 : vector<2x128xf32>
    %cst_34 = arith.constant 1.000000e+00 : f32
    %148 = vector.broadcast %cst_34 : f32 to vector<2x128xf32>
    %149 = arith.addf %148, %147 : vector<2x128xf32>
    %150 = arith.divf %148, %149 : vector<2x128xf32>
    %151 = vector.extract_strided_slice %140 {offsets = [0, 128], sizes = [2, 128], strides = [1, 1]} : vector<2x384xf32> to vector<2x128xf32>
    %152 = vector.extract_strided_slice %142 {offsets = [0, 128], sizes = [2, 128], strides = [1, 1]} : vector<2x384xf32> to vector<2x128xf32>
    %153 = arith.addf %151, %152 : vector<2x128xf32>
    %154 = arith.negf %153 : vector<2x128xf32>
    %155 = math.exp %154 : vector<2x128xf32>
    %cst_35 = arith.constant 1.000000e+00 : f32
    %156 = vector.broadcast %cst_35 : f32 to vector<2x128xf32>
    %157 = arith.addf %156, %155 : vector<2x128xf32>
    %158 = arith.divf %156, %157 : vector<2x128xf32>
    %159 = vector.extract_strided_slice %140 {offsets = [0, 256], sizes = [2, 128], strides = [1, 1]} : vector<2x384xf32> to vector<2x128xf32>
    %160 = vector.extract_strided_slice %142 {offsets = [0, 256], sizes = [2, 128], strides = [1, 1]} : vector<2x384xf32> to vector<2x128xf32>
    %161 = vector.broadcast %4 : vector<1x128xf32> to vector<2x128xf32>
    %162 = arith.addf %160, %161 : vector<2x128xf32>
    %163 = arith.mulf %150, %162 : vector<2x128xf32>
    %164 = arith.addf %159, %163 : vector<2x128xf32>
    %165 = math.tanh %164 : vector<2x128xf32>
    %166 = vector.extract_strided_slice %158 {offsets = [0, 0], sizes = [2, 32], strides = [1, 1]} : vector<2x128xf32> to vector<2x32xf32>
    %cst_36 = arith.constant 1.000000e+00 : f32
    %167 = vector.broadcast %cst_36 : f32 to vector<2x32xf32>
    %168 = arith.subf %167, %166 : vector<2x32xf32>
    %169 = vector.extract_strided_slice %165 {offsets = [0, 0], sizes = [2, 32], strides = [1, 1]} : vector<2x128xf32> to vector<2x32xf32>
    %170 = arith.mulf %168, %169 : vector<2x32xf32>
    %171 = arith.mulf %166, %132 : vector<2x32xf32>
    %172 = arith.addf %170, %171 : vector<2x32xf32>
    %c4_i32 = arith.constant 4 : i32
    %173 = arith.index_cast %c4_i32 : i32 to index
    %c0_37 = arith.constant 0 : index
    %c0_38 = arith.constant 0 : index
    %174 = vector.load %arg0[%173, %c0_37, %c0_38] : memref<8x2x1xf32, #tpu.memory_space<vmem>>, vector<1x2x1xf32>
    %175 = vector.shape_cast %174 : vector<1x2x1xf32> to vector<2x1xf32>
    %176 = vector.broadcast %175 : vector<2x1xf32> to vector<2x384xf32>
    %177 = vector.broadcast %2 : vector<1x384xf32> to vector<2x384xf32>
    %178 = arith.mulf %176, %177 : vector<2x384xf32>
    %179 = vector.broadcast %3 : vector<1x384xf32> to vector<2x384xf32>
    %180 = arith.addf %178, %179 : vector<2x384xf32>
    %181 = arith.truncf %172 : vector<2x32xf32> to vector<2x32xbf16>
    %cst_39 = arith.constant dense<0.000000e+00> : vector<2x384xf32>
    %182 = tpu.matmul %181, %0, %cst_39 {dimension_numbers = #tpu.dot_dimension_numbers<[1], [0], [0], [1], [0, 0, 1, 1], [], []>} : vector<2x32xbf16>, vector<32x384xbf16>, vector<2x384xf32> -> vector<2x384xf32>
    %183 = vector.extract_strided_slice %180 {offsets = [0, 0], sizes = [2, 128], strides = [1, 1]} : vector<2x384xf32> to vector<2x128xf32>
    %184 = vector.extract_strided_slice %182 {offsets = [0, 0], sizes = [2, 128], strides = [1, 1]} : vector<2x384xf32> to vector<2x128xf32>
    %185 = arith.addf %183, %184 : vector<2x128xf32>
    %186 = arith.negf %185 : vector<2x128xf32>
    %187 = math.exp %186 : vector<2x128xf32>
    %cst_40 = arith.constant 1.000000e+00 : f32
    %188 = vector.broadcast %cst_40 : f32 to vector<2x128xf32>
    %189 = arith.addf %188, %187 : vector<2x128xf32>
    %190 = arith.divf %188, %189 : vector<2x128xf32>
    %191 = vector.extract_strided_slice %180 {offsets = [0, 128], sizes = [2, 128], strides = [1, 1]} : vector<2x384xf32> to vector<2x128xf32>
    %192 = vector.extract_strided_slice %182 {offsets = [0, 128], sizes = [2, 128], strides = [1, 1]} : vector<2x384xf32> to vector<2x128xf32>
    %193 = arith.addf %191, %192 : vector<2x128xf32>
    %194 = arith.negf %193 : vector<2x128xf32>
    %195 = math.exp %194 : vector<2x128xf32>
    %cst_41 = arith.constant 1.000000e+00 : f32
    %196 = vector.broadcast %cst_41 : f32 to vector<2x128xf32>
    %197 = arith.addf %196, %195 : vector<2x128xf32>
    %198 = arith.divf %196, %197 : vector<2x128xf32>
    %199 = vector.extract_strided_slice %180 {offsets = [0, 256], sizes = [2, 128], strides = [1, 1]} : vector<2x384xf32> to vector<2x128xf32>
    %200 = vector.extract_strided_slice %182 {offsets = [0, 256], sizes = [2, 128], strides = [1, 1]} : vector<2x384xf32> to vector<2x128xf32>
    %201 = vector.broadcast %4 : vector<1x128xf32> to vector<2x128xf32>
    %202 = arith.addf %200, %201 : vector<2x128xf32>
    %203 = arith.mulf %190, %202 : vector<2x128xf32>
    %204 = arith.addf %199, %203 : vector<2x128xf32>
    %205 = math.tanh %204 : vector<2x128xf32>
    %206 = vector.extract_strided_slice %198 {offsets = [0, 0], sizes = [2, 32], strides = [1, 1]} : vector<2x128xf32> to vector<2x32xf32>
    %cst_42 = arith.constant 1.000000e+00 : f32
    %207 = vector.broadcast %cst_42 : f32 to vector<2x32xf32>
    %208 = arith.subf %207, %206 : vector<2x32xf32>
    %209 = vector.extract_strided_slice %205 {offsets = [0, 0], sizes = [2, 32], strides = [1, 1]} : vector<2x128xf32> to vector<2x32xf32>
    %210 = arith.mulf %208, %209 : vector<2x32xf32>
    %211 = arith.mulf %206, %172 : vector<2x32xf32>
    %212 = arith.addf %210, %211 : vector<2x32xf32>
    %c5_i32 = arith.constant 5 : i32
    %213 = arith.index_cast %c5_i32 : i32 to index
    %c0_43 = arith.constant 0 : index
    %c0_44 = arith.constant 0 : index
    %214 = vector.load %arg0[%213, %c0_43, %c0_44] : memref<8x2x1xf32, #tpu.memory_space<vmem>>, vector<1x2x1xf32>
    %215 = vector.shape_cast %214 : vector<1x2x1xf32> to vector<2x1xf32>
    %216 = vector.broadcast %215 : vector<2x1xf32> to vector<2x384xf32>
    %217 = vector.broadcast %2 : vector<1x384xf32> to vector<2x384xf32>
    %218 = arith.mulf %216, %217 : vector<2x384xf32>
    %219 = vector.broadcast %3 : vector<1x384xf32> to vector<2x384xf32>
    %220 = arith.addf %218, %219 : vector<2x384xf32>
    %221 = arith.truncf %212 : vector<2x32xf32> to vector<2x32xbf16>
    %cst_45 = arith.constant dense<0.000000e+00> : vector<2x384xf32>
    %222 = tpu.matmul %221, %0, %cst_45 {dimension_numbers = #tpu.dot_dimension_numbers<[1], [0], [0], [1], [0, 0, 1, 1], [], []>} : vector<2x32xbf16>, vector<32x384xbf16>, vector<2x384xf32> -> vector<2x384xf32>
    %223 = vector.extract_strided_slice %220 {offsets = [0, 0], sizes = [2, 128], strides = [1, 1]} : vector<2x384xf32> to vector<2x128xf32>
    %224 = vector.extract_strided_slice %222 {offsets = [0, 0], sizes = [2, 128], strides = [1, 1]} : vector<2x384xf32> to vector<2x128xf32>
    %225 = arith.addf %223, %224 : vector<2x128xf32>
    %226 = arith.negf %225 : vector<2x128xf32>
    %227 = math.exp %226 : vector<2x128xf32>
    %cst_46 = arith.constant 1.000000e+00 : f32
    %228 = vector.broadcast %cst_46 : f32 to vector<2x128xf32>
    %229 = arith.addf %228, %227 : vector<2x128xf32>
    %230 = arith.divf %228, %229 : vector<2x128xf32>
    %231 = vector.extract_strided_slice %220 {offsets = [0, 128], sizes = [2, 128], strides = [1, 1]} : vector<2x384xf32> to vector<2x128xf32>
    %232 = vector.extract_strided_slice %222 {offsets = [0, 128], sizes = [2, 128], strides = [1, 1]} : vector<2x384xf32> to vector<2x128xf32>
    %233 = arith.addf %231, %232 : vector<2x128xf32>
    %234 = arith.negf %233 : vector<2x128xf32>
    %235 = math.exp %234 : vector<2x128xf32>
    %cst_47 = arith.constant 1.000000e+00 : f32
    %236 = vector.broadcast %cst_47 : f32 to vector<2x128xf32>
    %237 = arith.addf %236, %235 : vector<2x128xf32>
    %238 = arith.divf %236, %237 : vector<2x128xf32>
    %239 = vector.extract_strided_slice %220 {offsets = [0, 256], sizes = [2, 128], strides = [1, 1]} : vector<2x384xf32> to vector<2x128xf32>
    %240 = vector.extract_strided_slice %222 {offsets = [0, 256], sizes = [2, 128], strides = [1, 1]} : vector<2x384xf32> to vector<2x128xf32>
    %241 = vector.broadcast %4 : vector<1x128xf32> to vector<2x128xf32>
    %242 = arith.addf %240, %241 : vector<2x128xf32>
    %243 = arith.mulf %230, %242 : vector<2x128xf32>
    %244 = arith.addf %239, %243 : vector<2x128xf32>
    %245 = math.tanh %244 : vector<2x128xf32>
    %246 = vector.extract_strided_slice %238 {offsets = [0, 0], sizes = [2, 32], strides = [1, 1]} : vector<2x128xf32> to vector<2x32xf32>
    %cst_48 = arith.constant 1.000000e+00 : f32
    %247 = vector.broadcast %cst_48 : f32 to vector<2x32xf32>
    %248 = arith.subf %247, %246 : vector<2x32xf32>
    %249 = vector.extract_strided_slice %245 {offsets = [0, 0], sizes = [2, 32], strides = [1, 1]} : vector<2x128xf32> to vector<2x32xf32>
    %250 = arith.mulf %248, %249 : vector<2x32xf32>
    %251 = arith.mulf %246, %212 : vector<2x32xf32>
    %252 = arith.addf %250, %251 : vector<2x32xf32>
    %c6_i32 = arith.constant 6 : i32
    %253 = arith.index_cast %c6_i32 : i32 to index
    %c0_49 = arith.constant 0 : index
    %c0_50 = arith.constant 0 : index
    %254 = vector.load %arg0[%253, %c0_49, %c0_50] : memref<8x2x1xf32, #tpu.memory_space<vmem>>, vector<1x2x1xf32>
    %255 = vector.shape_cast %254 : vector<1x2x1xf32> to vector<2x1xf32>
    %256 = vector.broadcast %255 : vector<2x1xf32> to vector<2x384xf32>
    %257 = vector.broadcast %2 : vector<1x384xf32> to vector<2x384xf32>
    %258 = arith.mulf %256, %257 : vector<2x384xf32>
    %259 = vector.broadcast %3 : vector<1x384xf32> to vector<2x384xf32>
    %260 = arith.addf %258, %259 : vector<2x384xf32>
    %261 = arith.truncf %252 : vector<2x32xf32> to vector<2x32xbf16>
    %cst_51 = arith.constant dense<0.000000e+00> : vector<2x384xf32>
    %262 = tpu.matmul %261, %0, %cst_51 {dimension_numbers = #tpu.dot_dimension_numbers<[1], [0], [0], [1], [0, 0, 1, 1], [], []>} : vector<2x32xbf16>, vector<32x384xbf16>, vector<2x384xf32> -> vector<2x384xf32>
    %263 = vector.extract_strided_slice %260 {offsets = [0, 0], sizes = [2, 128], strides = [1, 1]} : vector<2x384xf32> to vector<2x128xf32>
    %264 = vector.extract_strided_slice %262 {offsets = [0, 0], sizes = [2, 128], strides = [1, 1]} : vector<2x384xf32> to vector<2x128xf32>
    %265 = arith.addf %263, %264 : vector<2x128xf32>
    %266 = arith.negf %265 : vector<2x128xf32>
    %267 = math.exp %266 : vector<2x128xf32>
    %cst_52 = arith.constant 1.000000e+00 : f32
    %268 = vector.broadcast %cst_52 : f32 to vector<2x128xf32>
    %269 = arith.addf %268, %267 : vector<2x128xf32>
    %270 = arith.divf %268, %269 : vector<2x128xf32>
    %271 = vector.extract_strided_slice %260 {offsets = [0, 128], sizes = [2, 128], strides = [1, 1]} : vector<2x384xf32> to vector<2x128xf32>
    %272 = vector.extract_strided_slice %262 {offsets = [0, 128], sizes = [2, 128], strides = [1, 1]} : vector<2x384xf32> to vector<2x128xf32>
    %273 = arith.addf %271, %272 : vector<2x128xf32>
    %274 = arith.negf %273 : vector<2x128xf32>
    %275 = math.exp %274 : vector<2x128xf32>
    %cst_53 = arith.constant 1.000000e+00 : f32
    %276 = vector.broadcast %cst_53 : f32 to vector<2x128xf32>
    %277 = arith.addf %276, %275 : vector<2x128xf32>
    %278 = arith.divf %276, %277 : vector<2x128xf32>
    %279 = vector.extract_strided_slice %260 {offsets = [0, 256], sizes = [2, 128], strides = [1, 1]} : vector<2x384xf32> to vector<2x128xf32>
    %280 = vector.extract_strided_slice %262 {offsets = [0, 256], sizes = [2, 128], strides = [1, 1]} : vector<2x384xf32> to vector<2x128xf32>
    %281 = vector.broadcast %4 : vector<1x128xf32> to vector<2x128xf32>
    %282 = arith.addf %280, %281 : vector<2x128xf32>
    %283 = arith.mulf %270, %282 : vector<2x128xf32>
    %284 = arith.addf %279, %283 : vector<2x128xf32>
    %285 = math.tanh %284 : vector<2x128xf32>
    %286 = vector.extract_strided_slice %278 {offsets = [0, 0], sizes = [2, 32], strides = [1, 1]} : vector<2x128xf32> to vector<2x32xf32>
    %cst_54 = arith.constant 1.000000e+00 : f32
    %287 = vector.broadcast %cst_54 : f32 to vector<2x32xf32>
    %288 = arith.subf %287, %286 : vector<2x32xf32>
    %289 = vector.extract_strided_slice %285 {offsets = [0, 0], sizes = [2, 32], strides = [1, 1]} : vector<2x128xf32> to vector<2x32xf32>
    %290 = arith.mulf %288, %289 : vector<2x32xf32>
    %291 = arith.mulf %286, %252 : vector<2x32xf32>
    %292 = arith.addf %290, %291 : vector<2x32xf32>
    %c7_i32 = arith.constant 7 : i32
    %293 = arith.index_cast %c7_i32 : i32 to index
    %c0_55 = arith.constant 0 : index
    %c0_56 = arith.constant 0 : index
    %294 = vector.load %arg0[%293, %c0_55, %c0_56] : memref<8x2x1xf32, #tpu.memory_space<vmem>>, vector<1x2x1xf32>
    %295 = vector.shape_cast %294 : vector<1x2x1xf32> to vector<2x1xf32>
    %296 = vector.broadcast %295 : vector<2x1xf32> to vector<2x384xf32>
    %297 = vector.broadcast %2 : vector<1x384xf32> to vector<2x384xf32>
    %298 = arith.mulf %296, %297 : vector<2x384xf32>
    %299 = vector.broadcast %3 : vector<1x384xf32> to vector<2x384xf32>
    %300 = arith.addf %298, %299 : vector<2x384xf32>
    %301 = arith.truncf %292 : vector<2x32xf32> to vector<2x32xbf16>
    %cst_57 = arith.constant dense<0.000000e+00> : vector<2x384xf32>
    %302 = tpu.matmul %301, %0, %cst_57 {dimension_numbers = #tpu.dot_dimension_numbers<[1], [0], [0], [1], [0, 0, 1, 1], [], []>} : vector<2x32xbf16>, vector<32x384xbf16>, vector<2x384xf32> -> vector<2x384xf32>
    %303 = vector.extract_strided_slice %300 {offsets = [0, 0], sizes = [2, 128], strides = [1, 1]} : vector<2x384xf32> to vector<2x128xf32>
    %304 = vector.extract_strided_slice %302 {offsets = [0, 0], sizes = [2, 128], strides = [1, 1]} : vector<2x384xf32> to vector<2x128xf32>
    %305 = arith.addf %303, %304 : vector<2x128xf32>
    %306 = arith.negf %305 : vector<2x128xf32>
    %307 = math.exp %306 : vector<2x128xf32>
    %cst_58 = arith.constant 1.000000e+00 : f32
    %308 = vector.broadcast %cst_58 : f32 to vector<2x128xf32>
    %309 = arith.addf %308, %307 : vector<2x128xf32>
    %310 = arith.divf %308, %309 : vector<2x128xf32>
    %311 = vector.extract_strided_slice %300 {offsets = [0, 128], sizes = [2, 128], strides = [1, 1]} : vector<2x384xf32> to vector<2x128xf32>
    %312 = vector.extract_strided_slice %302 {offsets = [0, 128], sizes = [2, 128], strides = [1, 1]} : vector<2x384xf32> to vector<2x128xf32>
    %313 = arith.addf %311, %312 : vector<2x128xf32>
    %314 = arith.negf %313 : vector<2x128xf32>
    %315 = math.exp %314 : vector<2x128xf32>
    %cst_59 = arith.constant 1.000000e+00 : f32
    %316 = vector.broadcast %cst_59 : f32 to vector<2x128xf32>
    %317 = arith.addf %316, %315 : vector<2x128xf32>
    %318 = arith.divf %316, %317 : vector<2x128xf32>
    %319 = vector.extract_strided_slice %300 {offsets = [0, 256], sizes = [2, 128], strides = [1, 1]} : vector<2x384xf32> to vector<2x128xf32>
    %320 = vector.extract_strided_slice %302 {offsets = [0, 256], sizes = [2, 128], strides = [1, 1]} : vector<2x384xf32> to vector<2x128xf32>
    %321 = vector.broadcast %4 : vector<1x128xf32> to vector<2x128xf32>
    %322 = arith.addf %320, %321 : vector<2x128xf32>
    %323 = arith.mulf %310, %322 : vector<2x128xf32>
    %324 = arith.addf %319, %323 : vector<2x128xf32>
    %325 = math.tanh %324 : vector<2x128xf32>
    %326 = vector.extract_strided_slice %318 {offsets = [0, 0], sizes = [2, 32], strides = [1, 1]} : vector<2x128xf32> to vector<2x32xf32>
    %cst_60 = arith.constant 1.000000e+00 : f32
    %327 = vector.broadcast %cst_60 : f32 to vector<2x32xf32>
    %328 = arith.subf %327, %326 : vector<2x32xf32>
    %329 = vector.extract_strided_slice %325 {offsets = [0, 0], sizes = [2, 32], strides = [1, 1]} : vector<2x128xf32> to vector<2x32xf32>
    %330 = arith.mulf %328, %329 : vector<2x32xf32>
    %331 = arith.mulf %326, %292 : vector<2x32xf32>
    %332 = arith.addf %330, %331 : vector<2x32xf32>
    %c8_i32 = arith.constant 8 : i32
    %333 = vector.broadcast %5 : vector<1x32xf32> to vector<2x32xf32>
    %334 = arith.mulf %332, %333 : vector<2x32xf32>
    %335 = vector.broadcast %6 : vector<1x32xf32> to vector<2x32xf32>
    %336 = arith.addf %334, %335 : vector<2x32xf32>
    %cst_61 = arith.constant 0.000000e+00 : f32
    %337 = vector.broadcast %cst_61 : f32 to vector<2x32xf32>
    %338 = arith.cmpf oge, %336, %337 : vector<2x32xf32>
    %cst_62 = arith.constant 0.00999999977 : f32
    %339 = vector.broadcast %cst_62 : f32 to vector<2x32xf32>
    %340 = arith.mulf %339, %336 : vector<2x32xf32>
    %341 = arith.select %338, %336, %340 : vector<2x32xi1>, vector<2x32xf32>
    %342 = arith.truncf %341 : vector<2x32xf32> to vector<2x32xbf16>
    %cst_63 = arith.constant dense<0.000000e+00> : vector<2x32xf32>
    %343 = tpu.matmul %342, %1, %cst_63 {dimension_numbers = #tpu.dot_dimension_numbers<[1], [0], [0], [1], [0, 0, 1, 1], [], []>} : vector<2x32xbf16>, vector<32x32xbf16>, vector<2x32xf32> -> vector<2x32xf32>
    %344 = vector.broadcast %7 : vector<1x32xf32> to vector<2x32xf32>
    %345 = arith.addf %343, %344 : vector<2x32xf32>
    %346 = vector.broadcast %8 : vector<1x32xf32> to vector<2x32xf32>
    %347 = arith.mulf %345, %346 : vector<2x32xf32>
    %348 = vector.broadcast %9 : vector<1x32xf32> to vector<2x32xf32>
    %349 = arith.addf %347, %348 : vector<2x32xf32>
    %cst_64 = arith.constant 0.000000e+00 : f32
    %350 = vector.broadcast %cst_64 : f32 to vector<2x32xf32>
    %351 = arith.cmpf oge, %349, %350 : vector<2x32xf32>
    %cst_65 = arith.constant 0.00999999977 : f32
    %352 = vector.broadcast %cst_65 : f32 to vector<2x32xf32>
    %353 = arith.mulf %352, %349 : vector<2x32xf32>
    %354 = arith.select %351, %349, %353 : vector<2x32xi1>, vector<2x32xf32>
    %355 = vector.broadcast %10 : vector<1x32xf32> to vector<2x32xf32>
    %356 = arith.mulf %354, %355 : vector<2x32xf32>
    %cst_66 = arith.constant dense<0.000000e+00> : vector<2xf32>
    %357 = vector.multi_reduction <add>, %356, %cst_66 [1] : vector<2x32xf32> to vector<2xf32>
    %358 = vector.shape_cast %357 : vector<2xf32> to vector<2x1xf32>
    %359 = vector.broadcast %11 : vector<1x1xf32> to vector<2x1xf32>
    %360 = arith.addf %358, %359 : vector<2x1xf32>
    %c0_67 = arith.constant 0 : index
    %c0_68 = arith.constant 0 : index
    %361 = vector.load %arg3[%c0_67, %c0_68] : memref<2x1xf32, #tpu.memory_space<vmem>>, vector<2x1xf32>
    tpu.vector_store %arg3[%c0_67, %c0_68], %360 {strides = array<i32>} : memref<2x1xf32, #tpu.memory_space<vmem>>, vector<2x1xf32>,
    return
  }
}

</mosaic_0001>

<llo_original>
// kernel: gru_base_forward.1
$region0: #{gru_base_forward.1}
  #allocation0 [shape = 'u32[]', space=smem, size = 0x4, offset = 0x4, fixed_abs, tag = 'smem constant byte address 0x4 - core index']
  #allocation1 [shape = 'u32[72,128]{1,0:T(1,128)}', space=vmem, size = 0x9000, scoped, tag = 'internal scratch']
  %s0 = inlined_call_operand.vmem [shape: f32[8,2,1], index: 0, kind: input, shape index: {}]
  %s1 = inlined_call_operand.vmem [shape: bf16[32,416], index: 1, kind: input, shape index: {}]
  %s2 = inlined_call_operand.vmem [shape: f32[10,384], index: 2, kind: input, shape index: {}]
  %s3 = inlined_call_operand.vmem [shape: f32[2,1], index: 3, kind: output, shape index: {}]
  %s4 = sld [smem:[#allocation0]]
  $region22: #{gru_base_forward.1} parent=0
    _
  %s6 = ssub.s32 1, %s4
  %s7 = scalar_select 0, %s6, %s4
  // Predicated region
  $region2: #{gru_base_forward.1} parent=0 // pred_check
    _
  $region3: #{gru_base_forward.1} parent=0 // pred_check_branch
    %9 = sbr.rel (0) target = $region5
  $region4: #{gru_base_forward.1} parent=0 // pred_region
    _
  $region5: #{gru_base_forward.1} parent=0 // pred_fallthru
    _
  // Predicated region
  $region6: #{gru_base_forward.1} parent=0 // pred_check
    _
  $region7: #{gru_base_forward.1} parent=0 // pred_check_branch
    %11 = sbr.rel (0) target = $region9
  $region8: #{gru_base_forward.1} parent=0 // pred_region
    _
  $region9: #{gru_base_forward.1} parent=0 // pred_fallthru
    _
  // Predicated region
  $region10: #{gru_base_forward.1} parent=0 // pred_check
    _
  $region11: #{gru_base_forward.1} parent=0 // pred_check_branch
    %13 = sbr.rel (0) target = $region13
  $region12: #{gru_base_forward.1} parent=0 // pred_region
    _
  $region13: #{gru_base_forward.1} parent=0 // pred_fallthru
    _
  %v15 = vld [vmem:[%s1] sm:$0xff]
  %v16 = vld [vmem:[%s1 + $0x8] sm:$0xf]
  %v17 = vld [vmem:[%s1 + $0x10] sm:$0xff]
  %v18 = vld [vmem:[%s1 + $0x18] sm:$0xf]
  %v19 = vld [vmem:[%s1 + $0x20] sm:$0xff]
  %v20 = vld [vmem:[%s1 + $0x28] sm:$0xf]
  %v21 = vld [vmem:[%s1 + $0x30] sm:$0xff]
  %v22 = vld [vmem:[%s1 + $0x38] sm:$0xf]
  %v23 = vld [vmem:[%s1 + $0xc] sm:$0xf]
  %v24 = vld [vmem:[%s1 + $0x1c] sm:$0xf]
  %v25 = vld [vmem:[%s1 + $0x2c] sm:$0xf]
  %v26 = vld [vmem:[%s1 + $0x3c] sm:$0xf]
  %v27 = vld [vmem:[%s2] ss:$8 sm:$0x7]
  %s28 = scalar_lea.vmem %s2, 1
  %v29 = vld [vmem:[%s28] ss:$8 sm:$0x7]
  %v30 = vld [vmem:[%s2 + $0x2] ss:$0 sm:$0xff]
  %v31 = vld [vmem:[%s2 + $0x3] ss:$0 sm:$0xff]
  %v32 = vld [vmem:[%s2 + $0x4] ss:$0 sm:$0xff]
  %v33 = vld [vmem:[%s2 + $0x5] ss:$0 sm:$0xff]
  %v34 = vld [vmem:[%s2 + $0x6] ss:$0 sm:$0xff]
  %v35 = vld [vmem:[%s2 + $0x7] ss:$0 sm:$0xff]
  %v36 = vld [vmem:[%s2 + $0x18] ss:$0 sm:$0xff]
  %v37 = vld [vmem:[%s2 + $0x19] ss:$0 sm:$0xff]
  %v38 = vld [vmem:[%s0] sm:$0x3]
  %40 = vset.pattern.permute.xlu0 0
  %41 = vperm.xlu0 %40, %v38
  %v42 = vpop.permute.xlu0 %41
  %v45 = vperm.slane %v27, 0
  %v46 = vperm.slane %v27, 1
  %v47 = vperm.slane %v27, 2
  %v51 = vmul.f32 %v42, %v45
  %v52 = vmul.f32 %v42, %v46
  %v53 = vmul.f32 %v42, %v47
  %v55 = vperm.slane %v29, 0
  %v56 = vperm.slane %v29, 1
  %v57 = vperm.slane %v29, 2
  %v61 = vadd.f32 %v51, %v55
  %v62 = vadd.f32 %v52, %v56
  %v63 = vadd.f32 %v53, %v57
  %v72 = vunpack.c.l.b16 %v15
  %v73 = vunpack.c.h.b16 %v15
  %v74 = vunpack.c.l.b16 %v16
  %v75 = vunpack.c.l.b16 %v17
  %v76 = vunpack.c.h.b16 %v17
  %v77 = vunpack.c.l.b16 %v18
  %v78 = vunpack.c.l.b16 %v19
  %v79 = vunpack.c.h.b16 %v19
  %v80 = vunpack.c.l.b16 %v20
  %v81 = vunpack.c.l.b16 %v21
  %v82 = vunpack.c.h.b16 %v21
  %v83 = vunpack.c.l.b16 %v22
  %v84 = vpack.c.b16 %v75, %v72
  %v85 = vpack.c.b16 %v76, %v73
  %v86 = vpack.c.b16 %v77, %v74
  %v87 = vpack.c.b16 %v81, %v78
  %v88 = vpack.c.b16 %v82, %v79
  %v89 = vpack.c.b16 %v83, %v80
  %vm96 = vcmask 261120
  %v98 = vsel %vm96, 0, 0
  %100 = vmatpush.bf16.msra.mxu0 0
  %101 = vmatpush.bf16.msra.mxu0 0
  %102 = vmatpush.bf16.msra.mxu0 0
  %103 = vmatpush.bf16.msra.mxu0 0
  %104 = vmatpush.bf16.msra.mxu0 0
  %105 = vmatpush.bf16.msra.mxu0 0
  %106 = vmatpush.bf16.msra.mxu0 %v87
  %107 = vmatpush.bf16.msra.mxu0 %v84
  %108 = vmatmul.bf16.gmra.mxu0 %v98
  %v109 = vpop.f32.mrf.mxu0
  %v110 = vadd.f32 0.0, %v109
  %v111 = vpop.f32.mrf.mxu0
  %112 = vdwg.mxu0
  %113 = vmatpush.bf16.msra.mxu0 0
  %114 = vmatpush.bf16.msra.mxu0 0
  %115 = vmatpush.bf16.msra.mxu0 0
  %116 = vmatpush.bf16.msra.mxu0 0
  %117 = vmatpush.bf16.msra.mxu0 0
  %118 = vmatpush.bf16.msra.mxu0 0
  %119 = vmatpush.bf16.msra.mxu0 %v88
  %120 = vmatpush.bf16.msra.mxu0 %v85
  %121 = vmatmul.bf16.gmra.mxu0 %v98
  %v122 = vpop.f32.mrf.mxu0
  %v123 = vadd.f32 0.0, %v122
  %v124 = vpop.f32.mrf.mxu0
  %125 = vdwg.mxu0
  %126 = vmatpush.bf16.msra.mxu0 0
  %127 = vmatpush.bf16.msra.mxu0 0
  %128 = vmatpush.bf16.msra.mxu0 0
  %129 = vmatpush.bf16.msra.mxu0 0
  %130 = vmatpush.bf16.msra.mxu0 0
  %131 = vmatpush.bf16.msra.mxu0 0
  %132 = vmatpush.bf16.msra.mxu0 %v89
  %133 = vmatpush.bf16.msra.mxu0 %v86
  %134 = vmatmul.bf16.gmra.mxu0 %v98
  %v135 = vpop.f32.mrf.mxu0
  %v136 = vadd.f32 0.0, %v135
  %v137 = vpop.f32.mrf.mxu0
  %138 = vdwg.mxu0
  %v139 = vadd.f32 %v61, %v110
  %v140 = vxor.u32 %v139, 2147483648
  %v141 = vmul.f32 %v140, 1.442695
  %v142 = vpow.pop %v141
  %v143 = vadd.f32 %v142, 1.0
  %v144 = vrcp.pop %v143
  %v145 = vmul.f32 %v143, %v144
  %v146 = vsub.f32 1.0, %v145
  %v147 = vmul.f32 %v144, %v146
  %v148 = vadd.f32 %v144, %v147
  %vm149 = vweird.f32 %v143
  %vm150 = vweird.f32 %v144
  %vm151 = vmor %vm149, %vm150
  %v152 = vsel %vm151, %v144, %v148
  %v153 = vand.u32 2147483647, %v143
  %vm154 = vcmp.eq.f32.partialorder %v153, 8.507059e+37
  %v155 = vand.u32 %v143, 2147483648
  %v156 = vor.u32 1.1754944e-38, %v155
  %v157 = vsel %vm154, %v156, %v152
  %v158 = vmul.f32 1.0, %v157
  %v159 = vadd.f32 %v62, %v123
  %v160 = vxor.u32 %v159, 2147483648
  %v161 = vmul.f32 %v160, 1.442695
  %v162 = vpow.pop %v161
  %v163 = vadd.f32 %v162, 1.0
  %v164 = vrcp.pop %v163
  %v165 = vmul.f32 %v163, %v164
  %v166 = vsub.f32 1.0, %v165
  %v167 = vmul.f32 %v164, %v166
  %v168 = vadd.f32 %v164, %v167
  %vm169 = vweird.f32 %v163
  %vm170 = vweird.f32 %v164
  %vm171 = vmor %vm169, %vm170
  %v172 = vsel %vm171, %v164, %v168
  %v173 = vand.u32 2147483647, %v163
  %vm174 = vcmp.eq.f32.partialorder %v173, 8.507059e+37
  %v175 = vand.u32 %v163, 2147483648
  %v176 = vor.u32 1.1754944e-38, %v175
  %v177 = vsel %vm174, %v176, %v172
  %v178 = vmul.f32 1.0, %v177
  %v179 = vadd.f32 %v136, %v30
  %v180 = vmul.f32 %v158, %v179
  %v181 = vadd.f32 %v63, %v180
  %v182 = vtanh.pop %v181
  %v183 = vsub.f32 1.0, %v178
  %v184 = vmul.f32 %v183, %v182
  %v185 = vmul.f32 %v178, 0.0
  %v186 = vadd.f32 %v184, %v185
  %s187 = scalar_lea.vmem %s0, 2
  %v188 = vld [vmem:[%s187] sm:$0x3]
  %190 = vset.pattern.permute.xlu0 0
  %191 = vperm.xlu0 %190, %v188
  %v192 = vpop.permute.xlu0 %191
  %v194 = vmul.f32 %v192, %v45
  %v195 = vmul.f32 %v192, %v46
  %v196 = vmul.f32 %v192, %v47
  %v197 = vadd.f32 %v194, %v55
  %v198 = vadd.f32 %v195, %v56
  %v199 = vadd.f32 %v196, %v57
  %v200 = vpack.c.bf16 %v186, %v186
  %v202 = vsel %vm96, %v200, 0
  %204 = vmatpush.bf16.msra.mxu0 0
  %205 = vmatpush.bf16.msra.mxu0 0
  %206 = vmatpush.bf16.msra.mxu0 0
  %207 = vmatpush.bf16.msra.mxu0 0
  %208 = vmatpush.bf16.msra.mxu0 0
  %209 = vmatpush.bf16.msra.mxu0 0
  %210 = vmatpush.bf16.msra.mxu0 %v87
  %211 = vmatpush.bf16.msra.mxu0 %v84
  %212 = vmatmul.bf16.gmra.mxu0 %v202
  %v213 = vpop.f32.mrf.mxu0
  %v214 = vadd.f32 0.0, %v213
  %v215 = vpop.f32.mrf.mxu0
  %216 = vdwg.mxu0
  %217 = vmatpush.bf16.msra.mxu0 0
  %218 = vmatpush.bf16.msra.mxu0 0
  %219 = vmatpush.bf16.msra.mxu0 0
  %220 = vmatpush.bf16.msra.mxu0 0
  %221 = vmatpush.bf16.msra.mxu0 0
  %222 = vmatpush.bf16.msra.mxu0 0
  %223 = vmatpush.bf16.msra.mxu0 %v88
  %224 = vmatpush.bf16.msra.mxu0 %v85
  %225 = vmatmul.bf16.gmra.mxu0 %v202
  %v226 = vpop.f32.mrf.mxu0
  %v227 = vadd.f32 0.0, %v226
  %v228 = vpop.f32.mrf.mxu0
  %229 = vdwg.mxu0
  %230 = vmatpush.bf16.msra.mxu0 0
  %231 = vmatpush.bf16.msra.mxu0 0
  %232 = vmatpush.bf16.msra.mxu0 0
  %233 = vmatpush.bf16.msra.mxu0 0
  %234 = vmatpush.bf16.msra.mxu0 0
  %235 = vmatpush.bf16.msra.mxu0 0
  %236 = vmatpush.bf16.msra.mxu0 %v89
  %237 = vmatpush.bf16.msra.mxu0 %v86
  %238 = vmatmul.bf16.gmra.mxu0 %v202
  %v239 = vpop.f32.mrf.mxu0
  %v240 = vadd.f32 0.0, %v239
  %v241 = vpop.f32.mrf.mxu0
  %242 = vdwg.mxu0
  %v243 = vadd.f32 %v197, %v214
  %v244 = vxor.u32 %v243, 2147483648
  %v245 = vmul.f32 %v244, 1.442695
  %v246 = vpow.pop %v245
  %v247 = vadd.f32 %v246, 1.0
  %v248 = vrcp.pop %v247
  %v249 = vmul.f32 %v247, %v248
  %v250 = vsub.f32 1.0, %v249
  %v251 = vmul.f32 %v248, %v250
  %v252 = vadd.f32 %v248, %v251
  %vm253 = vweird.f32 %v247
  %vm254 = vweird.f32 %v248
  %vm255 = vmor %vm253, %vm254
  %v256 = vsel %vm255, %v248, %v252
  %v257 = vand.u32 2147483647, %v247
  %vm258 = vcmp.eq.f32.partialorder %v257, 8.507059e+37
  %v259 = vand.u32 %v247, 2147483648
  %v260 = vor.u32 1.1754944e-38, %v259
  %v261 = vsel %vm258, %v260, %v256
  %v262 = vmul.f32 1.0, %v261
  %v263 = vadd.f32 %v198, %v227
  %v264 = vxor.u32 %v263, 2147483648
  %v265 = vmul.f32 %v264, 1.442695
  %v266 = vpow.pop %v265
  %v267 = vadd.f32 %v266, 1.0
  %v268 = vrcp.pop %v267
  %v269 = vmul.f32 %v267, %v268
  %v270 = vsub.f32 1.0, %v269
  %v271 = vmul.f32 %v268, %v270
  %v272 = vadd.f32 %v268, %v271
  %vm273 = vweird.f32 %v267
  %vm274 = vweird.f32 %v268
  %vm275 = vmor %vm273, %vm274
  %v276 = vsel %vm275, %v268, %v272
  %v277 = vand.u32 2147483647, %v267
  %vm278 = vcmp.eq.f32.partialorder %v277, 8.507059e+37
  %v279 = vand.u32 %v267, 2147483648
  %v280 = vor.u32 1.1754944e-38, %v279
  %v281 = vsel %vm278, %v280, %v276
  %v282 = vmul.f32 1.0, %v281
  %v283 = vadd.f32 %v240, %v30
  %v284 = vmul.f32 %v262, %v283
  %v285 = vadd.f32 %v199, %v284
  %v286 = vtanh.pop %v285
  %v287 = vsub.f32 1.0, %v282
  %v288 = vmul.f32 %v287, %v286
  %v289 = vmul.f32 %v282, %v186
  %v290 = vadd.f32 %v288, %v289
  %s291 = scalar_lea.vmem %s0, 4
  %v292 = vld [vmem:[%s291] sm:$0x3]
  %294 = vset.pattern.permute.xlu0 0
  %295 = vperm.xlu0 %294, %v292
  %v296 = vpop.permute.xlu0 %295
  %v298 = vmul.f32 %v296, %v45
  %v299 = vmul.f32 %v296, %v46
  %v300 = vmul.f32 %v296, %v47
  %v301 = vadd.f32 %v298, %v55
  %v302 = vadd.f32 %v299, %v56
  %v303 = vadd.f32 %v300, %v57
  %v304 = vpack.c.bf16 %v290, %v290
  %v306 = vsel %vm96, %v304, 0
  %308 = vmatpush.bf16.msra.mxu0 0
  %309 = vmatpush.bf16.msra.mxu0 0
  %310 = vmatpush.bf16.msra.mxu0 0
  %311 = vmatpush.bf16.msra.mxu0 0
  %312 = vmatpush.bf16.msra.mxu0 0
  %313 = vmatpush.bf16.msra.mxu0 0
  %314 = vmatpush.bf16.msra.mxu0 %v87
  %315 = vmatpush.bf16.msra.mxu0 %v84
  %316 = vmatmul.bf16.gmra.mxu0 %v306
  %v317 = vpop.f32.mrf.mxu0
  %v318 = vadd.f32 0.0, %v317
  %v319 = vpop.f32.mrf.mxu0
  %320 = vdwg.mxu0
  %321 = vmatpush.bf16.msra.mxu0 0
  %322 = vmatpush.bf16.msra.mxu0 0
  %323 = vmatpush.bf16.msra.mxu0 0
  %324 = vmatpush.bf16.msra.mxu0 0
  %325 = vmatpush.bf16.msra.mxu0 0
  %326 = vmatpush.bf16.msra.mxu0 0
  %327 = vmatpush.bf16.msra.mxu0 %v88
  %328 = vmatpush.bf16.msra.mxu0 %v85
  %329 = vmatmul.bf16.gmra.mxu0 %v306
  %v330 = vpop.f32.mrf.mxu0
  %v331 = vadd.f32 0.0, %v330
  %v332 = vpop.f32.mrf.mxu0
  %333 = vdwg.mxu0
  %334 = vmatpush.bf16.msra.mxu0 0
  %335 = vmatpush.bf16.msra.mxu0 0
  %336 = vmatpush.bf16.msra.mxu0 0
  %337 = vmatpush.bf16.msra.mxu0 0
  %338 = vmatpush.bf16.msra.mxu0 0
  %339 = vmatpush.bf16.msra.mxu0 0
  %340 = vmatpush.bf16.msra.mxu0 %v89
  %341 = vmatpush.bf16.msra.mxu0 %v86
  %342 = vmatmul.bf16.gmra.mxu0 %v306
  %v343 = vpop.f32.mrf.mxu0
  %v344 = vadd.f32 0.0, %v343
  %v345 = vpop.f32.mrf.mxu0
  %346 = vdwg.mxu0
  %v347 = vadd.f32 %v301, %v318
  %v348 = vxor.u32 %v347, 2147483648
  %v349 = vmul.f32 %v348, 1.442695
  %v350 = vpow.pop %v349
  %v351 = vadd.f32 %v350, 1.0
  %v352 = vrcp.pop %v351
  %v353 = vmul.f32 %v351, %v352
  %v354 = vsub.f32 1.0, %v353
  %v355 = vmul.f32 %v352, %v354
  %v356 = vadd.f32 %v352, %v355
  %vm357 = vweird.f32 %v351
  %vm358 = vweird.f32 %v352
  %vm359 = vmor %vm357, %vm358
  %v360 = vsel %vm359, %v352, %v356
  %v361 = vand.u32 2147483647, %v351
  %vm362 = vcmp.eq.f32.partialorder %v361, 8.507059e+37
  %v363 = vand.u32 %v351, 2147483648
  %v364 = vor.u32 1.1754944e-38, %v363
  %v365 = vsel %vm362, %v364, %v360
  %v366 = vmul.f32 1.0, %v365
  %v367 = vadd.f32 %v302, %v331
  %v368 = vxor.u32 %v367, 2147483648
  %v369 = vmul.f32 %v368, 1.442695
  %v370 = vpow.pop %v369
  %v371 = vadd.f32 %v370, 1.0
  %v372 = vrcp.pop %v371
  %v373 = vmul.f32 %v371, %v372
  %v374 = vsub.f32 1.0, %v373
  %v375 = vmul.f32 %v372, %v374
  %v376 = vadd.f32 %v372, %v375
  %vm377 = vweird.f32 %v371
  %vm378 = vweird.f32 %v372
  %vm379 = vmor %vm377, %vm378
  %v380 = vsel %vm379, %v372, %v376
  %v381 = vand.u32 2147483647, %v371
  %vm382 = vcmp.eq.f32.partialorder %v381, 8.507059e+37
  %v383 = vand.u32 %v371, 2147483648
  %v384 = vor.u32 1.1754944e-38, %v383
  %v385 = vsel %vm382, %v384, %v380
  %v386 = vmul.f32 1.0, %v385
  %v387 = vadd.f32 %v344, %v30
  %v388 = vmul.f32 %v366, %v387
  %v389 = vadd.f32 %v303, %v388
  %v390 = vtanh.pop %v389
  %v391 = vsub.f32 1.0, %v386
  %v392 = vmul.f32 %v391, %v390
  %v393 = vmul.f32 %v386, %v290
  %v394 = vadd.f32 %v392, %v393
  %s395 = scalar_lea.vmem %s0, 6
  %v396 = vld [vmem:[%s395] sm:$0x3]
  %398 = vset.pattern.permute.xlu0 0
  %399 = vperm.xlu0 %398, %v396
  %v400 = vpop.permute.xlu0 %399
  %v402 = vmul.f32 %v400, %v45
  %v403 = vmul.f32 %v400, %v46
  %v404 = vmul.f32 %v400, %v47
  %v405 = vadd.f32 %v402, %v55
  %v406 = vadd.f32 %v403, %v56
  %v407 = vadd.f32 %v404, %v57
  %v408 = vpack.c.bf16 %v394, %v394
  %v410 = vsel %vm96, %v408, 0
  %412 = vmatpush.bf16.msra.mxu0 0
  %413 = vmatpush.bf16.msra.mxu0 0
  %414 = vmatpush.bf16.msra.mxu0 0
  %415 = vmatpush.bf16.msra.mxu0 0
  %416 = vmatpush.bf16.msra.mxu0 0
  %417 = vmatpush.bf16.msra.mxu0 0
  %418 = vmatpush.bf16.msra.mxu0 %v87
  %419 = vmatpush.bf16.msra.mxu0 %v84
  %420 = vmatmul.bf16.gmra.mxu0 %v410
  %v421 = vpop.f32.mrf.mxu0
  %v422 = vadd.f32 0.0, %v421
  %v423 = vpop.f32.mrf.mxu0
  %424 = vdwg.mxu0
  %425 = vmatpush.bf16.msra.mxu0 0
  %426 = vmatpush.bf16.msra.mxu0 0
  %427 = vmatpush.bf16.msra.mxu0 0
  %428 = vmatpush.bf16.msra.mxu0 0
  %429 = vmatpush.bf16.msra.mxu0 0
  %430 = vmatpush.bf16.msra.mxu0 0
  %431 = vmatpush.bf16.msra.mxu0 %v88
  %432 = vmatpush.bf16.msra.mxu0 %v85
  %433 = vmatmul.bf16.gmra.mxu0 %v410
  %v434 = vpop.f32.mrf.mxu0
  %v435 = vadd.f32 0.0, %v434
  %v436 = vpop.f32.mrf.mxu0
  %437 = vdwg.mxu0
  %438 = vmatpush.bf16.msra.mxu0 0
  %439 = vmatpush.bf16.msra.mxu0 0
  %440 = vmatpush.bf16.msra.mxu0 0
  %441 = vmatpush.bf16.msra.mxu0 0
  %442 = vmatpush.bf16.msra.mxu0 0
  %443 = vmatpush.bf16.msra.mxu0 0
  %444 = vmatpush.bf16.msra.mxu0 %v89
  %445 = vmatpush.bf16.msra.mxu0 %v86
  %446 = vmatmul.bf16.gmra.mxu0 %v410
  %v447 = vpop.f32.mrf.mxu0
  %v448 = vadd.f32 0.0, %v447
  %v449 = vpop.f32.mrf.mxu0
  %450 = vdwg.mxu0
  %v451 = vadd.f32 %v405, %v422
  %v452 = vxor.u32 %v451, 2147483648
  %v453 = vmul.f32 %v452, 1.442695
  %v454 = vpow.pop %v453
  %v455 = vadd.f32 %v454, 1.0
  %v456 = vrcp.pop %v455
  %v457 = vmul.f32 %v455, %v456
  %v458 = vsub.f32 1.0, %v457
  %v459 = vmul.f32 %v456, %v458
  %v460 = vadd.f32 %v456, %v459
  %vm461 = vweird.f32 %v455
  %vm462 = vweird.f32 %v456
  %vm463 = vmor %vm461, %vm462
  %v464 = vsel %vm463, %v456, %v460
  %v465 = vand.u32 2147483647, %v455
  %vm466 = vcmp.eq.f32.partialorder %v465, 8.507059e+37
  %v467 = vand.u32 %v455, 2147483648
  %v468 = vor.u32 1.1754944e-38, %v467
  %v469 = vsel %vm466, %v468, %v464
  %v470 = vmul.f32 1.0, %v469
  %v471 = vadd.f32 %v406, %v435
  %v472 = vxor.u32 %v471, 2147483648
  %v473 = vmul.f32 %v472, 1.442695
  %v474 = vpow.pop %v473
  %v475 = vadd.f32 %v474, 1.0
  %v476 = vrcp.pop %v475
  %v477 = vmul.f32 %v475, %v476
  %v478 = vsub.f32 1.0, %v477
  %v479 = vmul.f32 %v476, %v478
  %v480 = vadd.f32 %v476, %v479
  %vm481 = vweird.f32 %v475
  %vm482 = vweird.f32 %v476
  %vm483 = vmor %vm481, %vm482
  %v484 = vsel %vm483, %v476, %v480
  %v485 = vand.u32 2147483647, %v475
  %vm486 = vcmp.eq.f32.partialorder %v485, 8.507059e+37
  %v487 = vand.u32 %v475, 2147483648
  %v488 = vor.u32 1.1754944e-38, %v487
  %v489 = vsel %vm486, %v488, %v484
  %v490 = vmul.f32 1.0, %v489
  %v491 = vadd.f32 %v448, %v30
  %v492 = vmul.f32 %v470, %v491
  %v493 = vadd.f32 %v407, %v492
  %v494 = vtanh.pop %v493
  %v495 = vsub.f32 1.0, %v490
  %v496 = vmul.f32 %v495, %v494
  %v497 = vmul.f32 %v490, %v394
  %v498 = vadd.f32 %v496, %v497
  %s499 = scalar_lea.vmem %s0, 8
  %v500 = vld [vmem:[%s499] sm:$0x3]
  %502 = vset.pattern.permute.xlu0 0
  %503 = vperm.xlu0 %502, %v500
  %v504 = vpop.permute.xlu0 %503
  %v506 = vmul.f32 %v504, %v45
  %v507 = vmul.f32 %v504, %v46
  %v508 = vmul.f32 %v504, %v47
  %v509 = vadd.f32 %v506, %v55
  %v510 = vadd.f32 %v507, %v56
  %v511 = vadd.f32 %v508, %v57
  %v512 = vpack.c.bf16 %v498, %v498
  %v514 = vsel %vm96, %v512, 0
  %516 = vmatpush.bf16.msra.mxu0 0
  %517 = vmatpush.bf16.msra.mxu0 0
  %518 = vmatpush.bf16.msra.mxu0 0
  %519 = vmatpush.bf16.msra.mxu0 0
  %520 = vmatpush.bf16.msra.mxu0 0
  %521 = vmatpush.bf16.msra.mxu0 0
  %522 = vmatpush.bf16.msra.mxu0 %v87
  %523 = vmatpush.bf16.msra.mxu0 %v84
  %524 = vmatmul.bf16.gmra.mxu0 %v514
  %v525 = vpop.f32.mrf.mxu0
  %v526 = vadd.f32 0.0, %v525
  %v527 = vpop.f32.mrf.mxu0
  %528 = vdwg.mxu0
  %529 = vmatpush.bf16.msra.mxu0 0
  %530 = vmatpush.bf16.msra.mxu0 0
  %531 = vmatpush.bf16.msra.mxu0 0
  %532 = vmatpush.bf16.msra.mxu0 0
  %533 = vmatpush.bf16.msra.mxu0 0
  %534 = vmatpush.bf16.msra.mxu0 0
  %535 = vmatpush.bf16.msra.mxu0 %v88
  %536 = vmatpush.bf16.msra.mxu0 %v85
  %537 = vmatmul.bf16.gmra.mxu0 %v514
  %v538 = vpop.f32.mrf.mxu0
  %v539 = vadd.f32 0.0, %v538
  %v540 = vpop.f32.mrf.mxu0
  %541 = vdwg.mxu0
  %542 = vmatpush.bf16.msra.mxu0 0
  %543 = vmatpush.bf16.msra.mxu0 0
  %544 = vmatpush.bf16.msra.mxu0 0
  %545 = vmatpush.bf16.msra.mxu0 0
  %546 = vmatpush.bf16.msra.mxu0 0
  %547 = vmatpush.bf16.msra.mxu0 0
  %548 = vmatpush.bf16.msra.mxu0 %v89
  %549 = vmatpush.bf16.msra.mxu0 %v86
  %550 = vmatmul.bf16.gmra.mxu0 %v514
  %v551 = vpop.f32.mrf.mxu0
  %v552 = vadd.f32 0.0, %v551
  %v553 = vpop.f32.mrf.mxu0
  %554 = vdwg.mxu0
  %v555 = vadd.f32 %v509, %v526
  %v556 = vxor.u32 %v555, 2147483648
  %v557 = vmul.f32 %v556, 1.442695
  %v558 = vpow.pop %v557
  %v559 = vadd.f32 %v558, 1.0
  %v560 = vrcp.pop %v559
  %v561 = vmul.f32 %v559, %v560
  %v562 = vsub.f32 1.0, %v561
  %v563 = vmul.f32 %v560, %v562
  %v564 = vadd.f32 %v560, %v563
  %vm565 = vweird.f32 %v559
  %vm566 = vweird.f32 %v560
  %vm567 = vmor %vm565, %vm566
  %v568 = vsel %vm567, %v560, %v564
  %v569 = vand.u32 2147483647, %v559
  %vm570 = vcmp.eq.f32.partialorder %v569, 8.507059e+37
  %v571 = vand.u32 %v559, 2147483648
  %v572 = vor.u32 1.1754944e-38, %v571
  %v573 = vsel %vm570, %v572, %v568
  %v574 = vmul.f32 1.0, %v573
  %v575 = vadd.f32 %v510, %v539
  %v576 = vxor.u32 %v575, 2147483648
  %v577 = vmul.f32 %v576, 1.442695
  %v578 = vpow.pop %v577
  %v579 = vadd.f32 %v578, 1.0
  %v580 = vrcp.pop %v579
  %v581 = vmul.f32 %v579, %v580
  %v582 = vsub.f32 1.0, %v581
  %v583 = vmul.f32 %v580, %v582
  %v584 = vadd.f32 %v580, %v583
  %vm585 = vweird.f32 %v579
  %vm586 = vweird.f32 %v580
  %vm587 = vmor %vm585, %vm586
  %v588 = vsel %vm587, %v580, %v584
  %v589 = vand.u32 2147483647, %v579
  %vm590 = vcmp.eq.f32.partialorder %v589, 8.507059e+37
  %v591 = vand.u32 %v579, 2147483648
  %v592 = vor.u32 1.1754944e-38, %v591
  %v593 = vsel %vm590, %v592, %v588
  %v594 = vmul.f32 1.0, %v593
  %v595 = vadd.f32 %v552, %v30
  %v596 = vmul.f32 %v574, %v595
  %v597 = vadd.f32 %v511, %v596
  %v598 = vtanh.pop %v597
  %v599 = vsub.f32 1.0, %v594
  %v600 = vmul.f32 %v599, %v598
  %v601 = vmul.f32 %v594, %v498
  %v602 = vadd.f32 %v600, %v601
  %s603 = scalar_lea.vmem %s0, 10
  %v604 = vld [vmem:[%s603] sm:$0x3]
  %606 = vset.pattern.permute.xlu0 0
  %607 = vperm.xlu0 %606, %v604
  %v608 = vpop.permute.xlu0 %607
  %v610 = vmul.f32 %v608, %v45
  %v611 = vmul.f32 %v608, %v46
  %v612 = vmul.f32 %v608, %v47
  %v613 = vadd.f32 %v610, %v55
  %v614 = vadd.f32 %v611, %v56
  %v615 = vadd.f32 %v612, %v57
  %v616 = vpack.c.bf16 %v602, %v602
  %v618 = vsel %vm96, %v616, 0
  %620 = vmatpush.bf16.msra.mxu0 0
  %621 = vmatpush.bf16.msra.mxu0 0
  %622 = vmatpush.bf16.msra.mxu0 0
  %623 = vmatpush.bf16.msra.mxu0 0
  %624 = vmatpush.bf16.msra.mxu0 0
  %625 = vmatpush.bf16.msra.mxu0 0
  %626 = vmatpush.bf16.msra.mxu0 %v87
  %627 = vmatpush.bf16.msra.mxu0 %v84
  %628 = vmatmul.bf16.gmra.mxu0 %v618
  %v629 = vpop.f32.mrf.mxu0
  %v630 = vadd.f32 0.0, %v629
  %v631 = vpop.f32.mrf.mxu0
  %632 = vdwg.mxu0
  %633 = vmatpush.bf16.msra.mxu0 0
  %634 = vmatpush.bf16.msra.mxu0 0
  %635 = vmatpush.bf16.msra.mxu0 0
  %636 = vmatpush.bf16.msra.mxu0 0
  %637 = vmatpush.bf16.msra.mxu0 0
  %638 = vmatpush.bf16.msra.mxu0 0
  %639 = vmatpush.bf16.msra.mxu0 %v88
  %640 = vmatpush.bf16.msra.mxu0 %v85
  %641 = vmatmul.bf16.gmra.mxu0 %v618
  %v642 = vpop.f32.mrf.mxu0
  %v643 = vadd.f32 0.0, %v642
  %v644 = vpop.f32.mrf.mxu0
  %645 = vdwg.mxu0
  %646 = vmatpush.bf16.msra.mxu0 0
  %647 = vmatpush.bf16.msra.mxu0 0
  %648 = vmatpush.bf16.msra.mxu0 0
  %649 = vmatpush.bf16.msra.mxu0 0
  %650 = vmatpush.bf16.msra.mxu0 0
  %651 = vmatpush.bf16.msra.mxu0 0
  %652 = vmatpush.bf16.msra.mxu0 %v89
  %653 = vmatpush.bf16.msra.mxu0 %v86
  %654 = vmatmul.bf16.gmra.mxu0 %v618
  %v655 = vpop.f32.mrf.mxu0
  %v656 = vadd.f32 0.0, %v655
  %v657 = vpop.f32.mrf.mxu0
  %658 = vdwg.mxu0
  %v659 = vadd.f32 %v613, %v630
  %v660 = vxor.u32 %v659, 2147483648
  %v661 = vmul.f32 %v660, 1.442695
  %v662 = vpow.pop %v661
  %v663 = vadd.f32 %v662, 1.0
  %v664 = vrcp.pop %v663
  %v665 = vmul.f32 %v663, %v664
  %v666 = vsub.f32 1.0, %v665
  %v667 = vmul.f32 %v664, %v666
  %v668 = vadd.f32 %v664, %v667
  %vm669 = vweird.f32 %v663
  %vm670 = vweird.f32 %v664
  %vm671 = vmor %vm669, %vm670
  %v672 = vsel %vm671, %v664, %v668
  %v673 = vand.u32 2147483647, %v663
  %vm674 = vcmp.eq.f32.partialorder %v673, 8.507059e+37
  %v675 = vand.u32 %v663, 2147483648
  %v676 = vor.u32 1.1754944e-38, %v675
  %v677 = vsel %vm674, %v676, %v672
  %v678 = vmul.f32 1.0, %v677
  %v679 = vadd.f32 %v614, %v643
  %v680 = vxor.u32 %v679, 2147483648
  %v681 = vmul.f32 %v680, 1.442695
  %v682 = vpow.pop %v681
  %v683 = vadd.f32 %v682, 1.0
  %v684 = vrcp.pop %v683
  %v685 = vmul.f32 %v683, %v684
  %v686 = vsub.f32 1.0, %v685
  %v687 = vmul.f32 %v684, %v686
  %v688 = vadd.f32 %v684, %v687
  %vm689 = vweird.f32 %v683
  %vm690 = vweird.f32 %v684
  %vm691 = vmor %vm689, %vm690
  %v692 = vsel %vm691, %v684, %v688
  %v693 = vand.u32 2147483647, %v683
  %vm694 = vcmp.eq.f32.partialorder %v693, 8.507059e+37
  %v695 = vand.u32 %v683, 2147483648
  %v696 = vor.u32 1.1754944e-38, %v695
  %v697 = vsel %vm694, %v696, %v692
  %v698 = vmul.f32 1.0, %v697
  %v699 = vadd.f32 %v656, %v30
  %v700 = vmul.f32 %v678, %v699
  %v701 = vadd.f32 %v615, %v700
  %v702 = vtanh.pop %v701
  %v703 = vsub.f32 1.0, %v698
  %v704 = vmul.f32 %v703, %v702
  %v705 = vmul.f32 %v698, %v602
  %v706 = vadd.f32 %v704, %v705
  %s707 = scalar_lea.vmem %s0, 12
  %v708 = vld [vmem:[%s707] sm:$0x3]
  %710 = vset.pattern.permute.xlu0 0
  %711 = vperm.xlu0 %710, %v708
  %v712 = vpop.permute.xlu0 %711
  %v714 = vmul.f32 %v712, %v45
  %v715 = vmul.f32 %v712, %v46
  %v716 = vmul.f32 %v712, %v47
  %v717 = vadd.f32 %v714, %v55
  %v718 = vadd.f32 %v715, %v56
  %v719 = vadd.f32 %v716, %v57
  %v720 = vpack.c.bf16 %v706, %v706
  %v722 = vsel %vm96, %v720, 0
  %724 = vmatpush.bf16.msra.mxu0 0
  %725 = vmatpush.bf16.msra.mxu0 0
  %726 = vmatpush.bf16.msra.mxu0 0
  %727 = vmatpush.bf16.msra.mxu0 0
  %728 = vmatpush.bf16.msra.mxu0 0
  %729 = vmatpush.bf16.msra.mxu0 0
  %730 = vmatpush.bf16.msra.mxu0 %v87
  %731 = vmatpush.bf16.msra.mxu0 %v84
  %732 = vmatmul.bf16.gmra.mxu0 %v722
  %v733 = vpop.f32.mrf.mxu0
  %v734 = vadd.f32 0.0, %v733
  %v735 = vpop.f32.mrf.mxu0
  %736 = vdwg.mxu0
  %737 = vmatpush.bf16.msra.mxu0 0
  %738 = vmatpush.bf16.msra.mxu0 0
  %739 = vmatpush.bf16.msra.mxu0 0
  %740 = vmatpush.bf16.msra.mxu0 0
  %741 = vmatpush.bf16.msra.mxu0 0
  %742 = vmatpush.bf16.msra.mxu0 0
  %743 = vmatpush.bf16.msra.mxu0 %v88
  %744 = vmatpush.bf16.msra.mxu0 %v85
  %745 = vmatmul.bf16.gmra.mxu0 %v722
  %v746 = vpop.f32.mrf.mxu0
  %v747 = vadd.f32 0.0, %v746
  %v748 = vpop.f32.mrf.mxu0
  %749 = vdwg.mxu0
  %750 = vmatpush.bf16.msra.mxu0 0
  %751 = vmatpush.bf16.msra.mxu0 0
  %752 = vmatpush.bf16.msra.mxu0 0
  %753 = vmatpush.bf16.msra.mxu0 0
  %754 = vmatpush.bf16.msra.mxu0 0
  %755 = vmatpush.bf16.msra.mxu0 0
  %756 = vmatpush.bf16.msra.mxu0 %v89
  %757 = vmatpush.bf16.msra.mxu0 %v86
  %758 = vmatmul.bf16.gmra.mxu0 %v722
  %v759 = vpop.f32.mrf.mxu0
  %v760 = vadd.f32 0.0, %v759
  %v761 = vpop.f32.mrf.mxu0
  %762 = vdwg.mxu0
  %v763 = vadd.f32 %v717, %v734
  %v764 = vxor.u32 %v763, 2147483648
  %v765 = vmul.f32 %v764, 1.442695
  %v766 = vpow.pop %v765
  %v767 = vadd.f32 %v766, 1.0
  %v768 = vrcp.pop %v767
  %v769 = vmul.f32 %v767, %v768
  %v770 = vsub.f32 1.0, %v769
  %v771 = vmul.f32 %v768, %v770
  %v772 = vadd.f32 %v768, %v771
  %vm773 = vweird.f32 %v767
  %vm774 = vweird.f32 %v768
  %vm775 = vmor %vm773, %vm774
  %v776 = vsel %vm775, %v768, %v772
  %v777 = vand.u32 2147483647, %v767
  %vm778 = vcmp.eq.f32.partialorder %v777, 8.507059e+37
  %v779 = vand.u32 %v767, 2147483648
  %v780 = vor.u32 1.1754944e-38, %v779
  %v781 = vsel %vm778, %v780, %v776
  %v782 = vmul.f32 1.0, %v781
  %v783 = vadd.f32 %v718, %v747
  %v784 = vxor.u32 %v783, 2147483648
  %v785 = vmul.f32 %v784, 1.442695
  %v786 = vpow.pop %v785
  %v787 = vadd.f32 %v786, 1.0
  %v788 = vrcp.pop %v787
  %v789 = vmul.f32 %v787, %v788
  %v790 = vsub.f32 1.0, %v789
  %v791 = vmul.f32 %v788, %v790
  %v792 = vadd.f32 %v788, %v791
  %vm793 = vweird.f32 %v787
  %vm794 = vweird.f32 %v788
  %vm795 = vmor %vm793, %vm794
  %v796 = vsel %vm795, %v788, %v792
  %v797 = vand.u32 2147483647, %v787
  %vm798 = vcmp.eq.f32.partialorder %v797, 8.507059e+37
  %v799 = vand.u32 %v787, 2147483648
  %v800 = vor.u32 1.1754944e-38, %v799
  %v801 = vsel %vm798, %v800, %v796
  %v802 = vmul.f32 1.0, %v801
  %v803 = vadd.f32 %v760, %v30
  %v804 = vmul.f32 %v782, %v803
  %v805 = vadd.f32 %v719, %v804
  %v806 = vtanh.pop %v805
  %v807 = vsub.f32 1.0, %v802
  %v808 = vmul.f32 %v807, %v806
  %v809 = vmul.f32 %v802, %v706
  %v810 = vadd.f32 %v808, %v809
  %s811 = scalar_lea.vmem %s0, 14
  %v812 = vld [vmem:[%s811] sm:$0x3]
  %814 = vset.pattern.permute.xlu0 0
  %815 = vperm.xlu0 %814, %v812
  %v816 = vpop.permute.xlu0 %815
  %v818 = vmul.f32 %v816, %v45
  %v819 = vmul.f32 %v816, %v46
  %v820 = vmul.f32 %v816, %v47
  %v821 = vadd.f32 %v818, %v55
  %v822 = vadd.f32 %v819, %v56
  %v823 = vadd.f32 %v820, %v57
  %v824 = vpack.c.bf16 %v810, %v810
  %v826 = vsel %vm96, %v824, 0
  %828 = vmatpush.bf16.msra.mxu0 0
  %829 = vmatpush.bf16.msra.mxu0 0
  %830 = vmatpush.bf16.msra.mxu0 0
  %831 = vmatpush.bf16.msra.mxu0 0
  %832 = vmatpush.bf16.msra.mxu0 0
  %833 = vmatpush.bf16.msra.mxu0 0
  %834 = vmatpush.bf16.msra.mxu0 %v87
  %835 = vmatpush.bf16.msra.mxu0 %v84
  %836 = vmatmul.bf16.gmra.mxu0 %v826
  %v837 = vpop.f32.mrf.mxu0
  %v838 = vadd.f32 0.0, %v837
  %v839 = vpop.f32.mrf.mxu0
  %840 = vdwg.mxu0
  %841 = vmatpush.bf16.msra.mxu0 0
  %842 = vmatpush.bf16.msra.mxu0 0
  %843 = vmatpush.bf16.msra.mxu0 0
  %844 = vmatpush.bf16.msra.mxu0 0
  %845 = vmatpush.bf16.msra.mxu0 0
  %846 = vmatpush.bf16.msra.mxu0 0
  %847 = vmatpush.bf16.msra.mxu0 %v88
  %848 = vmatpush.bf16.msra.mxu0 %v85
  %849 = vmatmul.bf16.gmra.mxu0 %v826
  %v850 = vpop.f32.mrf.mxu0
  %v851 = vadd.f32 0.0, %v850
  %v852 = vpop.f32.mrf.mxu0
  %853 = vdwg.mxu0
  %854 = vmatpush.bf16.msra.mxu0 0
  %855 = vmatpush.bf16.msra.mxu0 0
  %856 = vmatpush.bf16.msra.mxu0 0
  %857 = vmatpush.bf16.msra.mxu0 0
  %858 = vmatpush.bf16.msra.mxu0 0
  %859 = vmatpush.bf16.msra.mxu0 0
  %860 = vmatpush.bf16.msra.mxu0 %v89
  %861 = vmatpush.bf16.msra.mxu0 %v86
  %862 = vmatmul.bf16.gmra.mxu0 %v826
  %v863 = vpop.f32.mrf.mxu0
  %v864 = vadd.f32 0.0, %v863
  %v865 = vpop.f32.mrf.mxu0
  %866 = vdwg.mxu0
  %v867 = vadd.f32 %v821, %v838
  %v868 = vxor.u32 %v867, 2147483648
  %v869 = vmul.f32 %v868, 1.442695
  %v870 = vpow.pop %v869
  %v871 = vadd.f32 %v870, 1.0
  %v872 = vrcp.pop %v871
  %v873 = vmul.f32 %v871, %v872
  %v874 = vsub.f32 1.0, %v873
  %v875 = vmul.f32 %v872, %v874
  %v876 = vadd.f32 %v872, %v875
  %vm877 = vweird.f32 %v871
  %vm878 = vweird.f32 %v872
  %vm879 = vmor %vm877, %vm878
  %v880 = vsel %vm879, %v872, %v876
  %v881 = vand.u32 2147483647, %v871
  %vm882 = vcmp.eq.f32.partialorder %v881, 8.507059e+37
  %v883 = vand.u32 %v871, 2147483648
  %v884 = vor.u32 1.1754944e-38, %v883
  %v885 = vsel %vm882, %v884, %v880
  %v886 = vmul.f32 1.0, %v885
  %v887 = vadd.f32 %v822, %v851
  %v888 = vxor.u32 %v887, 2147483648
  %v889 = vmul.f32 %v888, 1.442695
  %v890 = vpow.pop %v889
  %v891 = vadd.f32 %v890, 1.0
  %v892 = vrcp.pop %v891
  %v893 = vmul.f32 %v891, %v892
  %v894 = vsub.f32 1.0, %v893
  %v895 = vmul.f32 %v892, %v894
  %v896 = vadd.f32 %v892, %v895
  %vm897 = vweird.f32 %v891
  %vm898 = vweird.f32 %v892
  %vm899 = vmor %vm897, %vm898
  %v900 = vsel %vm899, %v892, %v896
  %v901 = vand.u32 2147483647, %v891
  %vm902 = vcmp.eq.f32.partialorder %v901, 8.507059e+37
  %v903 = vand.u32 %v891, 2147483648
  %v904 = vor.u32 1.1754944e-38, %v903
  %v905 = vsel %vm902, %v904, %v900
  %v906 = vmul.f32 1.0, %v905
  %v907 = vadd.f32 %v864, %v30
  %v908 = vmul.f32 %v886, %v907
  %v909 = vadd.f32 %v823, %v908
  %v910 = vtanh.pop %v909
  %v911 = vsub.f32 1.0, %v906
  %v912 = vmul.f32 %v911, %v910
  %v913 = vmul.f32 %v906, %v810
  %v914 = vadd.f32 %v912, %v913
  %v915 = vmul.f32 %v914, %v31
  %v916 = vadd.f32 %v915, %v32
  %vm917 = vcmp.ge.f32.partialorder %v916, 0.0
  %v918 = vmul.f32 %v916, 0.01
  %v919 = vsel %vm917, %v916, %v918
  %v920 = vpack.c.bf16 %v919, %v919
  %v925 = vunpack.c.l.b16 %v23
  %v926 = vunpack.c.l.b16 %v24
  %v927 = vunpack.c.l.b16 %v25
  %v928 = vunpack.c.l.b16 %v26
  %v929 = vpack.c.b16 %v926, %v925
  %v930 = vpack.c.b16 %v928, %v927
  %v934 = vsel %vm96, %v920, 0
  %936 = vmatpush.bf16.msra.mxu0 0
  %937 = vmatpush.bf16.msra.mxu0 0
  %938 = vmatpush.bf16.msra.mxu0 0
  %939 = vmatpush.bf16.msra.mxu0 0
  %940 = vmatpush.bf16.msra.mxu0 0
  %941 = vmatpush.bf16.msra.mxu0 0
  %942 = vmatpush.bf16.msra.mxu0 %v930
  %943 = vmatpush.bf16.msra.mxu0 %v929
  %944 = vmatmul.bf16.gmra.mxu0 %v934
  %v945 = vpop.f32.mrf.mxu0
  %v946 = vadd.f32 %v33, %v945
  %v947 = vpop.f32.mrf.mxu0
  %948 = vdwg.mxu0
  %v949 = vmul.f32 %v946, %v34
  %v950 = vadd.f32 %v949, %v35
  %vm951 = vcmp.ge.f32.partialorder %v950, 0.0
  %v952 = vmul.f32 %v950, 0.01
  %v953 = vsel %vm951, %v950, %v952
  %v954 = vmul.f32 %v953, %v36
  %vm955 = vcmask 254976
  %v956 = vsel %vm955, %v954, 0.0
  %957 = vadd.xlane.f32.xlu0 %v956
  %v958 = vpop.xlane.xlu0 %957
  %v959 = vadd.f32 %v958, %v37
  %vm960 = vcmask 1024
  %961 = vst.msk [vmem:[%s3] sm:$0x3] %vm960, %v959
  // Predicated region
  $region14: #{gru_base_forward.1} parent=0 // pred_check
    _
  $region15: #{gru_base_forward.1} parent=0 // pred_check_branch
    %963 = sbr.rel (0) target = $region17
  $region16: #{gru_base_forward.1} parent=0 // pred_region
    _
  $region17: #{gru_base_forward.1} parent=0 // pred_fallthru
    _
  // Predicated region
  $region18: #{gru_base_forward.1} parent=0 // pred_check
    _
  $region19: #{gru_base_forward.1} parent=0 // pred_check_branch
    %965 = sbr.rel (0) target = $region21
  $region20: #{gru_base_forward.1} parent=0 // pred_region
    _
  $region21: #{gru_base_forward.1} parent=0 // pred_fallthru
    _

</llo_original>
